<compile_context>
chip_gen: v7x
topology: tpu7x:2x2x1
jax: 0.10.0
libtpu: 0.0.40
codegen_flags: <defaults>
</compile_context>

<pallas_src>
import functools

import jax
import jax.numpy as jnp
import numpy as np
from jax.experimental import pallas as pl
from jax.experimental.pallas import tpu as pltpu

# BinarySCLoss.__init__ defaults (no learnable parameters).
K = 2
ALPHA = 1.0
EPS = 1e-6

_LIVE_PLANES = 32      # rough live f32 (Hs, Ws) planes in the unrolled kernel body


def _bce_with_logits(x, z):
    # Stable BCE-with-logits: max(x,0) - x*z + log(1 + exp(-|x|))  (exp arg <= 0).
    return jnp.maximum(x, 0.0) - x * z + jnp.log(1.0 + jnp.exp(-jnp.abs(x)))


def _sigmoid(x):
    return 1.0 / (1.0 + jnp.exp(-x))


def _offset_combos(k):
    """Unique (dx, ring-class) pairs; ring-class r0 = max(|dy|,|dx|,1)."""
    combos = []
    for dx in range(-k, k + 1):
        for r0 in range(max(abs(dx), 1), k + 1):
            combos.append((dx, r0))
    return tuple(combos)


def _ring_weight_cum(k):
    # W_cum[r] = sum_{i=r..k} 0.5^(i-1) / (2i+1)^2 : total weight of an offset whose
    # innermost containing ring is r (offsets are shared between rings r..k).
    return {r: sum((0.5 ** (i - 1)) / float((2 * i + 1) ** 2) for i in range(r, k + 1))
            for r in range(1, k + 1)}


def _sc_kernel(p_ref, t_ref, rowm_ref, colw_ref, out_ref, *, k, alpha, eps, combos):
    """One grid step over a packed (Hs, Ws) plane.

    Hs = Q*H_pad rows (Q lane-groups stacked along sublanes), Ws = lane-padded width
    with P images side by side. Validity masks are per-image-position, and padded
    rows/cols carry all-zero masks, so any roll wrap-around is always masked out.
    """
    p = p_ref[0]                 # (Hs, Ws) logits
    t = t_ref[0]                 # (Hs, Ws) binary labels
    hs, ws = p.shape

    bce = _bce_with_logits(p, t)     # center BCE (computed once)
    sig_p = _sigmoid(p)              # center sigmoid (rolled for neighbors)
    neg_sig_p = -sig_p               # hoisted negate

    rowm = rowm_ref[...]             # (Hs, 2k+1) 0/1 row validity
    rowf = {d: rowm[:, d + k:d + k + 1] for d in range(-k, k + 1)}     # (Hs, 1)

    # Hoisted: weighted + column-masked center-BCE planes, one per (dx, ring-class).
    bcw = {}
    for c, key in enumerate(combos):
        bcw[key] = bce * colw_ref[c:c + 1, :]                           # (Hs, Ws)

    acc = jnp.zeros_like(p)          # single weighted accumulator
    for dy in range(-k, k + 1):
        # Sublane-axis roll hoisted out of the dx loop (XLU rotate, 3 planes per dy).
        if dy == 0:
            p_dy, t_dy, s_dy = p, t, sig_p
        else:
            sh0 = (-dy) % hs
            p_dy = pltpu.roll(p, shift=sh0, axis=0)
            t_dy = pltpu.roll(t, shift=sh0, axis=0)
            s_dy = pltpu.roll(sig_p, shift=sh0, axis=0)

        drow = None
        for dx in range(-k, k + 1):
            if dx == 0:
                n_p, n_t, n_s = p_dy, t_dy, s_dy
            else:
                sh1 = (-dx) % ws
                n_p = pltpu.roll(p_dy, shift=sh1, axis=1)   # lane-axis XLU rotate
                n_t = pltpu.roll(t_dy, shift=sh1, axis=1)
                n_s = pltpu.roll(s_dy, shift=sh1, axis=1)

            mutual = _bce_with_logits(p * n_p, t * n_t)
            pairwise = jnp.exp(neg_sig_p * n_s)             # rolled sigmoid, no negate
            pw = pairwise if alpha == 1.0 else alpha * pairwise
            r0 = max(abs(dy), abs(dx), 1)
            term = bcw[(dx, r0)] * pl.reciprocal(mutual + pw + eps, approx=True)
            drow = term if drow is None else drow + term

        acc = acc + rowf[dy] * drow                          # row validity once per dy

    # Per-step partial sum (no loss-map HBM writeback).
    col_sum = jnp.sum(acc, axis=0, keepdims=True)            # (1, Ws)
    out_ref[0] = jnp.sum(col_sum, axis=1, keepdims=True)     # (1, 1)


def _largest_divisor_leq(n, cap):
    cap = max(1, min(n, cap))
    for d in range(cap, 0, -1):
        if n % d == 0:
            return d
    return 1


def _vmem_capacity_bytes():
    try:
        fn = getattr(pltpu, "get_tpu_info", None)
        if fn is not None:
            cap = int(fn().vmem_capacity_bytes)
            if cap > 0:
                return cap
    except Exception:
        pass
    return 64 * 1024 * 1024          # conservative fallback (v7x-sized)


def _sc_partial_sum(p, t, P, H, W, k, alpha, eps):
    """Sum of masked, weighted in-bounds terms over a batch chunk.

    p, t: [Bc, H, W] with Bc % P == 0. P images are packed along the lane axis,
    the lane axis is zero-padded to a multiple of 128 and the sublane axis to a
    multiple of 8; padded positions carry all-zero validity masks.
    """
    Bc = p.shape[0]
    B1 = Bc // P
    H_pad = ((H + 7) // 8) * 8
    Ws = P * W
    Ws_pad = ((Ws + 127) // 128) * 128

    # Lane packing: [Bc, H, W] -> [B1, H, P*W]
    if P > 1:
        p = p.reshape(B1, P, H, W).transpose(0, 2, 1, 3).reshape(B1, H, Ws)
        t = t.reshape(B1, P, H, W).transpose(0, 2, 1, 3).reshape(B1, H, Ws)
    else:
        p = p.reshape(B1, H, Ws)
        t = t.reshape(B1, H, Ws)
    if H_pad != H or Ws_pad != Ws:
        pad = ((0, 0), (0, H_pad - H), (0, Ws_pad - Ws))
        p = jnp.pad(p, pad)
        t = jnp.pad(t, pad)

    # Generation-aware VMEM sizing (128 MiB v5e/v6e -> ~96 MiB limit; 64 MiB v7x -> 48).
    cap = _vmem_capacity_bytes()
    vmem_limit = int(min((cap * 3) // 4, 96 * 1024 * 1024))
    plane_budget = max(4 * 1024 * 1024, vmem_limit // 3)
    plane_bytes = H_pad * Ws_pad * 4
    max_q = max(1, plane_budget // (plane_bytes * _LIVE_PLANES))
    if B1 >= 2:
        # Keep n_steps >= 2 so the "parallel" grid axis can feed both TensorCores
        # on v7x; on single-TC chips this costs at most one extra ~0.35us step.
        max_q = min(max_q, max(1, B1 // 2))
    Q = _largest_divisor_leq(B1, max_q)
    n_steps = B1 // Q
    Hs = Q * H_pad
    p = p.reshape(n_steps, Hs, Ws_pad)
    t = t.reshape(n_steps, Hs, Ws_pad)
    # TODO(synk): for single planes too large for VMEM (e.g. 2k x 2k on v7x's 64 MiB),
    # add H-strip tiling with a k-row halo instead of one full plane per grid step.

    # Host-precomputed separable validity tables (padded rows/cols -> all-zero).
    yy = np.arange(Hs) % H_pad
    row_mask = np.stack(
        [((yy < H) & (yy + d >= 0) & (yy + d < H)) for d in range(-k, k + 1)],
        axis=1).astype(np.float32)                             # (Hs, 2k+1)

    xx = np.arange(Ws_pad)
    xm = xx % W
    real_col = xx < Ws
    col_valid = {d: (real_col & (xm + d >= 0) & (xm + d < W)).astype(np.float32)
                 for d in range(-k, k + 1)}                    # (Ws_pad,)

    combos = _offset_combos(k)
    wcum = _ring_weight_cum(k)
    col_w = np.stack([col_valid[dx] * wcum[r0] for (dx, r0) in combos],
                     axis=0).astype(np.float32)                # (n_combos, Ws_pad)

    kernel = functools.partial(_sc_kernel, k=k, alpha=alpha, eps=eps, combos=combos)
    partial_sums = pl.pallas_call(
        kernel,
        out_shape=jax.ShapeDtypeStruct((n_steps, 1, 1), jnp.float32),
        grid=(n_steps,),
        in_specs=[
            pl.BlockSpec((1, Hs, Ws_pad), lambda g: (g, 0, 0)),
            pl.BlockSpec((1, Hs, Ws_pad), lambda g: (g, 0, 0)),
            pl.BlockSpec((Hs, 2 * k + 1), lambda g: (0, 0)),
            pl.BlockSpec((len(combos), Ws_pad), lambda g: (0, 0)),
        ],
        out_specs=pl.BlockSpec((1, 1, 1), lambda g: (g, 0, 0)),
        compiler_params=pltpu.CompilerParams(
            dimension_semantics=("parallel",),
            vmem_limit_bytes=vmem_limit,
        ),
    )(p, t, jnp.asarray(row_mask), jnp.asarray(col_w))

    return jnp.sum(partial_sums)


def binary_sc_loss(pred, target, k=K, alpha=ALPHA, eps=EPS):
    """pred, target: [B, 1, H, W] (NCHW logits / binary labels) -> scalar loss."""
    B, C, H, W = pred.shape
    assert C == 1
    p = pred[:, 0].astype(jnp.float32)
    t = target[:, 0].astype(jnp.float32)

    # Images per lane row; ragged remainder handled as a second small call
    # (no dummy images, so the shared separable validity masks stay exact).
    P = min(B, max(1, 128 // W)) if W < 128 else 1
    n_full = (B // P) * P

    total = jnp.zeros((), jnp.float32)
    if n_full > 0:
        total = total + _sc_partial_sum(p[:n_full], t[:n_full], P, H, W, k, alpha, eps)
    if n_full < B:
        P_rem = B - n_full
        total = total + _sc_partial_sum(p[n_full:], t[n_full:], P_rem, H, W, k, alpha, eps)

    # Closed-form contribution of out-of-bounds (masked-to-1.0) offsets.
    y1 = np.arange(H)
    x1 = np.arange(W)
    const_total = 0.0
    for i in range(1, k + 1):
        area = (2 * i + 1) ** 2
        w_i = (0.5 ** (i - 1)) / area
        ry = np.minimum(y1, i) + np.minimum(H - 1 - y1, i) + 1
        cx = np.minimum(x1, i) + np.minimum(W - 1 - x1, i) + 1
        const_total += w_i * float(np.sum(area - ry[:, None] * cx[None, :]))
    const_total *= B

    # mean over [B, H*W]
    return (total + const_total) / float(B * H * W)


def binary_sc_loss_ref(pred, target, k=K, alpha=ALPHA, eps=EPS):
    """Pure-JAX reference mirroring the PyTorch unfold semantics (zero pad)."""
    B, C, H, W = pred.shape
    p = pred[:, 0].astype(jnp.float32)
    t = target[:, 0].astype(jnp.float32)
    bce = _bce_with_logits(p, t)
    total = jnp.zeros((B, H, W), jnp.float32)
    for i in range(1, k + 1):
        pa = (2 * i + 1) ** 2
        pp = jnp.pad(p, ((0, 0), (i, i), (i, i)))
        tp = jnp.pad(t, ((0, 0), (i, i), (i, i)))
        op = jnp.pad(jnp.ones_like(t), ((0, 0), (i, i), (i, i)))
        acc = jnp.zeros((B, H, W), jnp.float32)
        for dy in range(-i, i + 1):
            for dx in range(-i, i + 1):
                n_p = pp[:, i + dy:i + dy + H, i + dx:i + dx + W]
                n_t = tp[:, i + dy:i + dy + H, i + dx:i + dx + W]
                invalid = op[:, i + dy:i + dy + H, i + dx:i + dx + W] == 0
                mutual = _bce_with_logits(p * n_p, t * n_t)
                pairwise = jnp.exp(-_sigmoid(p) * _sigmoid(n_p))
                term = bce / (mutual + alpha * pairwise + eps)
                acc = acc + jnp.where(invalid, 1.0, term)
        total = total + (0.5 ** (i - 1)) * acc / float(pa)
    return total.mean()


if __name__ == "__main__":
    key = jax.random.PRNGKey(0)
    k1, k2 = jax.random.split(key)
    B, C, H, W = 2, 1, 16, 16
    pred = jax.random.normal(k1, (B, C, H, W), dtype=jnp.float32)
    target = jax.random.bernoulli(k2, 0.5, (B, C, H, W)).astype(jnp.float32)

    loss = jax.block_until_ready(binary_sc_loss(pred, target))
    loss_ref = jax.block_until_ready(binary_sc_loss_ref(pred, target))

    # pl.reciprocal(approx=True) changes low-order bits -> compare at 2e-3.
    if not jnp.allclose(loss, loss_ref, rtol=2e-3, atol=2e-3):
        raise AssertionError(f"mismatch: kernel={loss} ref={loss_ref}")

    print("KERNEL_OK")
</pallas_src>

<mosaic_0001>
module attributes {stable_mosaic.version = 11 : i64} {
  func.func @_sc_kernel(%arg0: i32, %arg1: memref<1x16x128xf32, #tpu.memory_space<vmem>>, %arg2: memref<1x16x128xf32, #tpu.memory_space<vmem>>, %arg3: memref<16x5xf32, #tpu.memory_space<vmem>>, %arg4: memref<8x128xf32, #tpu.memory_space<vmem>>, %arg5: memref<1x1x1xf32, #tpu.memory_space<vmem>>) attributes {dimension_semantics = [#tpu.dimension_semantics<parallel>], iteration_bounds = array<i64: 1>, scalar_prefetch = 0 : i64, scratch_operands = 0 : i64, tpu.core_type = #tpu.core_type<tc>, window_params = [{transform_indices = @transform_0, window_bounds = array<i64: 1, 16, 128>}, {transform_indices = @transform_1, window_bounds = array<i64: 1, 16, 128>}, {pipeline_mode = #tpu.pipeline_mode<synchronous>, transform_indices = @transform_2, window_bounds = array<i64: 16, 5>}, {pipeline_mode = #tpu.pipeline_mode<synchronous>, transform_indices = @transform_3, window_bounds = array<i64: 8, 128>}, {transform_indices = @transform_4, window_bounds = array<i64: 1, 1, 1>}]} {
    %c0 = arith.constant 0 : index
    %c0_0 = arith.constant 0 : index
    %c0_1 = arith.constant 0 : index
    %0 = vector.load %arg1[%c0, %c0_0, %c0_1] : memref<1x16x128xf32, #tpu.memory_space<vmem>>, vector<1x16x128xf32>
    %1 = vector.shape_cast %0 : vector<1x16x128xf32> to vector<16x128xf32>
    %c0_2 = arith.constant 0 : index
    %c0_3 = arith.constant 0 : index
    %c0_4 = arith.constant 0 : index
    %2 = vector.load %arg2[%c0_2, %c0_3, %c0_4] : memref<1x16x128xf32, #tpu.memory_space<vmem>>, vector<1x16x128xf32>
    %3 = vector.shape_cast %2 : vector<1x16x128xf32> to vector<16x128xf32>
    %cst = arith.constant 0.000000e+00 : f32
    %4 = vector.broadcast %cst : f32 to vector<16x128xf32>
    %5 = arith.maximumf %1, %4 : vector<16x128xf32>
    %6 = arith.mulf %1, %3 : vector<16x128xf32>
    %7 = arith.subf %5, %6 : vector<16x128xf32>
    %8 = math.absf %1 : vector<16x128xf32>
    %cst_5 = arith.constant 0.000000e+00 : f32
    %9 = vector.broadcast %cst_5 : f32 to vector<16x128xf32>
    %10 = arith.subf %9, %8 : vector<16x128xf32>
    %11 = math.exp %10 : vector<16x128xf32>
    %cst_6 = arith.constant 1.000000e+00 : f32
    %12 = vector.broadcast %cst_6 : f32 to vector<16x128xf32>
    %13 = arith.addf %12, %11 : vector<16x128xf32>
    %14 = math.log %13 : vector<16x128xf32>
    %15 = arith.addf %7, %14 : vector<16x128xf32>
    %cst_7 = arith.constant 0.000000e+00 : f32
    %16 = vector.broadcast %cst_7 : f32 to vector<16x128xf32>
    %17 = arith.subf %16, %1 : vector<16x128xf32>
    %18 = math.exp %17 : vector<16x128xf32>
    %cst_8 = arith.constant 1.000000e+00 : f32
    %19 = vector.broadcast %cst_8 : f32 to vector<16x128xf32>
    %20 = arith.addf %19, %18 : vector<16x128xf32>
    %cst_9 = arith.constant 1.000000e+00 : f32
    %21 = vector.broadcast %cst_9 : f32 to vector<16x128xf32>
    %22 = arith.divf %21, %20 : vector<16x128xf32>
    %cst_10 = arith.constant 0.000000e+00 : f32
    %23 = vector.broadcast %cst_10 : f32 to vector<16x128xf32>
    %24 = arith.subf %23, %22 : vector<16x128xf32>
    %c0_11 = arith.constant 0 : index
    %c0_12 = arith.constant 0 : index
    %25 = vector.load %arg3[%c0_11, %c0_12] : memref<16x5xf32, #tpu.memory_space<vmem>>, vector<16x5xf32>
    %26 = vector.extract_strided_slice %25 {offsets = [0, 0], sizes = [16, 1], strides = [1, 1]} : vector<16x5xf32> to vector<16x1xf32>
    %27 = vector.extract_strided_slice %25 {offsets = [0, 1], sizes = [16, 1], strides = [1, 1]} : vector<16x5xf32> to vector<16x1xf32>
    %28 = vector.extract_strided_slice %25 {offsets = [0, 2], sizes = [16, 1], strides = [1, 1]} : vector<16x5xf32> to vector<16x1xf32>
    %29 = vector.extract_strided_slice %25 {offsets = [0, 3], sizes = [16, 1], strides = [1, 1]} : vector<16x5xf32> to vector<16x1xf32>
    %30 = vector.extract_strided_slice %25 {offsets = [0, 4], sizes = [16, 1], strides = [1, 1]} : vector<16x5xf32> to vector<16x1xf32>
    %c0_13 = arith.constant 0 : index
    %c0_14 = arith.constant 0 : index
    %31 = vector.load %arg4[%c0_13, %c0_14] : memref<8x128xf32, #tpu.memory_space<vmem>>, vector<1x128xf32>
    %32 = vector.broadcast %31 : vector<1x128xf32> to vector<16x128xf32>
    %33 = arith.mulf %15, %32 : vector<16x128xf32>
    %c1 = arith.constant 1 : index
    %c0_15 = arith.constant 0 : index
    %34 = vector.load %arg4[%c1, %c0_15] : memref<8x128xf32, #tpu.memory_space<vmem>>, vector<1x128xf32>
    %35 = vector.broadcast %34 : vector<1x128xf32> to vector<16x128xf32>
    %36 = arith.mulf %15, %35 : vector<16x128xf32>
    %c2 = arith.constant 2 : index
    %c0_16 = arith.constant 0 : index
    %37 = vector.load %arg4[%c2, %c0_16] : memref<8x128xf32, #tpu.memory_space<vmem>>, vector<1x128xf32>
    %38 = vector.broadcast %37 : vector<1x128xf32> to vector<16x128xf32>
    %39 = arith.mulf %15, %38 : vector<16x128xf32>
    %c3 = arith.constant 3 : index
    %c0_17 = arith.constant 0 : index
    %40 = vector.load %arg4[%c3, %c0_17] : memref<8x128xf32, #tpu.memory_space<vmem>>, vector<1x128xf32>
    %41 = vector.broadcast %40 : vector<1x128xf32> to vector<16x128xf32>
    %42 = arith.mulf %15, %41 : vector<16x128xf32>
    %c4 = arith.constant 4 : index
    %c0_18 = arith.constant 0 : index
    %43 = vector.load %arg4[%c4, %c0_18] : memref<8x128xf32, #tpu.memory_space<vmem>>, vector<1x128xf32>
    %44 = vector.broadcast %43 : vector<1x128xf32> to vector<16x128xf32>
    %45 = arith.mulf %15, %44 : vector<16x128xf32>
    %c5 = arith.constant 5 : index
    %c0_19 = arith.constant 0 : index
    %46 = vector.load %arg4[%c5, %c0_19] : memref<8x128xf32, #tpu.memory_space<vmem>>, vector<1x128xf32>
    %47 = vector.broadcast %46 : vector<1x128xf32> to vector<16x128xf32>
    %48 = arith.mulf %15, %47 : vector<16x128xf32>
    %c6 = arith.constant 6 : index
    %c0_20 = arith.constant 0 : index
    %49 = vector.load %arg4[%c6, %c0_20] : memref<8x128xf32, #tpu.memory_space<vmem>>, vector<1x128xf32>
    %50 = vector.broadcast %49 : vector<1x128xf32> to vector<16x128xf32>
    %51 = arith.mulf %15, %50 : vector<16x128xf32>
    %c7 = arith.constant 7 : index
    %c0_21 = arith.constant 0 : index
    %52 = vector.load %arg4[%c7, %c0_21] : memref<8x128xf32, #tpu.memory_space<vmem>>, vector<1x128xf32>
    %53 = vector.broadcast %52 : vector<1x128xf32> to vector<16x128xf32>
    %54 = arith.mulf %15, %53 : vector<16x128xf32>
    %cst_22 = arith.constant 0.000000e+00 : f32
    %55 = vector.broadcast %cst_22 : f32 to vector<16x128xf32>
    %c2_i32 = arith.constant 2 : i32
    %56 = tpu.dynamic_rotate %1 by %c2_i32 dim 0 : vector<16x128xf32>, i32 -> vector<16x128xf32>
    %c2_i32_23 = arith.constant 2 : i32
    %57 = tpu.dynamic_rotate %3 by %c2_i32_23 dim 0 : vector<16x128xf32>, i32 -> vector<16x128xf32>
    %c2_i32_24 = arith.constant 2 : i32
    %58 = tpu.dynamic_rotate %22 by %c2_i32_24 dim 0 : vector<16x128xf32>, i32 -> vector<16x128xf32>
    %c2_i32_25 = arith.constant 2 : i32
    %59 = tpu.dynamic_rotate %56 by %c2_i32_25 dim 1 : vector<16x128xf32>, i32 -> vector<16x128xf32>
    %c2_i32_26 = arith.constant 2 : i32
    %60 = tpu.dynamic_rotate %57 by %c2_i32_26 dim 1 : vector<16x128xf32>, i32 -> vector<16x128xf32>
    %c2_i32_27 = arith.constant 2 : i32
    %61 = tpu.dynamic_rotate %58 by %c2_i32_27 dim 1 : vector<16x128xf32>, i32 -> vector<16x128xf32>
    %62 = arith.mulf %1, %59 : vector<16x128xf32>
    %63 = arith.mulf %3, %60 : vector<16x128xf32>
    %cst_28 = arith.constant 0.000000e+00 : f32
    %64 = vector.broadcast %cst_28 : f32 to vector<16x128xf32>
    %65 = arith.maximumf %62, %64 : vector<16x128xf32>
    %66 = arith.mulf %62, %63 : vector<16x128xf32>
    %67 = arith.subf %65, %66 : vector<16x128xf32>
    %68 = math.absf %62 : vector<16x128xf32>
    %cst_29 = arith.constant 0.000000e+00 : f32
    %69 = vector.broadcast %cst_29 : f32 to vector<16x128xf32>
    %70 = arith.subf %69, %68 : vector<16x128xf32>
    %71 = math.exp %70 : vector<16x128xf32>
    %cst_30 = arith.constant 1.000000e+00 : f32
    %72 = vector.broadcast %cst_30 : f32 to vector<16x128xf32>
    %73 = arith.addf %72, %71 : vector<16x128xf32>
    %74 = math.log %73 : vector<16x128xf32>
    %75 = arith.addf %67, %74 : vector<16x128xf32>
    %76 = arith.mulf %24, %61 : vector<16x128xf32>
    %77 = math.exp %76 : vector<16x128xf32>
    %78 = arith.addf %75, %77 : vector<16x128xf32>
    %cst_31 = arith.constant 9.99999997E-7 : f32
    %79 = vector.broadcast %cst_31 : f32 to vector<16x128xf32>
    %80 = arith.addf %78, %79 : vector<16x128xf32>
    %81 = tpu.reciprocal %80 {approx = true} : vector<16x128xf32> -> vector<16x128xf32>
    %82 = arith.mulf %33, %81 : vector<16x128xf32>
    %c1_i32 = arith.constant 1 : i32
    %83 = tpu.dynamic_rotate %56 by %c1_i32 dim 1 : vector<16x128xf32>, i32 -> vector<16x128xf32>
    %c1_i32_32 = arith.constant 1 : i32
    %84 = tpu.dynamic_rotate %57 by %c1_i32_32 dim 1 : vector<16x128xf32>, i32 -> vector<16x128xf32>
    %c1_i32_33 = arith.constant 1 : i32
    %85 = tpu.dynamic_rotate %58 by %c1_i32_33 dim 1 : vector<16x128xf32>, i32 -> vector<16x128xf32>
    %86 = arith.mulf %1, %83 : vector<16x128xf32>
    %87 = arith.mulf %3, %84 : vector<16x128xf32>
    %cst_34 = arith.constant 0.000000e+00 : f32
    %88 = vector.broadcast %cst_34 : f32 to vector<16x128xf32>
    %89 = arith.maximumf %86, %88 : vector<16x128xf32>
    %90 = arith.mulf %86, %87 : vector<16x128xf32>
    %91 = arith.subf %89, %90 : vector<16x128xf32>
    %92 = math.absf %86 : vector<16x128xf32>
    %cst_35 = arith.constant 0.000000e+00 : f32
    %93 = vector.broadcast %cst_35 : f32 to vector<16x128xf32>
    %94 = arith.subf %93, %92 : vector<16x128xf32>
    %95 = math.exp %94 : vector<16x128xf32>
    %cst_36 = arith.constant 1.000000e+00 : f32
    %96 = vector.broadcast %cst_36 : f32 to vector<16x128xf32>
    %97 = arith.addf %96, %95 : vector<16x128xf32>
    %98 = math.log %97 : vector<16x128xf32>
    %99 = arith.addf %91, %98 : vector<16x128xf32>
    %100 = arith.mulf %24, %85 : vector<16x128xf32>
    %101 = math.exp %100 : vector<16x128xf32>
    %102 = arith.addf %99, %101 : vector<16x128xf32>
    %cst_37 = arith.constant 9.99999997E-7 : f32
    %103 = vector.broadcast %cst_37 : f32 to vector<16x128xf32>
    %104 = arith.addf %102, %103 : vector<16x128xf32>
    %105 = tpu.reciprocal %104 {approx = true} : vector<16x128xf32> -> vector<16x128xf32>
    %106 = arith.mulf %39, %105 : vector<16x128xf32>
    %107 = arith.addf %82, %106 : vector<16x128xf32>
    %108 = arith.mulf %1, %56 : vector<16x128xf32>
    %109 = arith.mulf %3, %57 : vector<16x128xf32>
    %cst_38 = arith.constant 0.000000e+00 : f32
    %110 = vector.broadcast %cst_38 : f32 to vector<16x128xf32>
    %111 = arith.maximumf %108, %110 : vector<16x128xf32>
    %112 = arith.mulf %108, %109 : vector<16x128xf32>
    %113 = arith.subf %111, %112 : vector<16x128xf32>
    %114 = math.absf %108 : vector<16x128xf32>
    %cst_39 = arith.constant 0.000000e+00 : f32
    %115 = vector.broadcast %cst_39 : f32 to vector<16x128xf32>
    %116 = arith.subf %115, %114 : vector<16x128xf32>
    %117 = math.exp %116 : vector<16x128xf32>
    %cst_40 = arith.constant 1.000000e+00 : f32
    %118 = vector.broadcast %cst_40 : f32 to vector<16x128xf32>
    %119 = arith.addf %118, %117 : vector<16x128xf32>
    %120 = math.log %119 : vector<16x128xf32>
    %121 = arith.addf %113, %120 : vector<16x128xf32>
    %122 = arith.mulf %24, %58 : vector<16x128xf32>
    %123 = math.exp %122 : vector<16x128xf32>
    %124 = arith.addf %121, %123 : vector<16x128xf32>
    %cst_41 = arith.constant 9.99999997E-7 : f32
    %125 = vector.broadcast %cst_41 : f32 to vector<16x128xf32>
    %126 = arith.addf %124, %125 : vector<16x128xf32>
    %127 = tpu.reciprocal %126 {approx = true} : vector<16x128xf32> -> vector<16x128xf32>
    %128 = arith.mulf %45, %127 : vector<16x128xf32>
    %129 = arith.addf %107, %128 : vector<16x128xf32>
    %c127_i32 = arith.constant 127 : i32
    %130 = tpu.dynamic_rotate %56 by %c127_i32 dim 1 : vector<16x128xf32>, i32 -> vector<16x128xf32>
    %c127_i32_42 = arith.constant 127 : i32
    %131 = tpu.dynamic_rotate %57 by %c127_i32_42 dim 1 : vector<16x128xf32>, i32 -> vector<16x128xf32>
    %c127_i32_43 = arith.constant 127 : i32
    %132 = tpu.dynamic_rotate %58 by %c127_i32_43 dim 1 : vector<16x128xf32>, i32 -> vector<16x128xf32>
    %133 = arith.mulf %1, %130 : vector<16x128xf32>
    %134 = arith.mulf %3, %131 : vector<16x128xf32>
    %cst_44 = arith.constant 0.000000e+00 : f32
    %135 = vector.broadcast %cst_44 : f32 to vector<16x128xf32>
    %136 = arith.maximumf %133, %135 : vector<16x128xf32>
    %137 = arith.mulf %133, %134 : vector<16x128xf32>
    %138 = arith.subf %136, %137 : vector<16x128xf32>
    %139 = math.absf %133 : vector<16x128xf32>
    %cst_45 = arith.constant 0.000000e+00 : f32
    %140 = vector.broadcast %cst_45 : f32 to vector<16x128xf32>
    %141 = arith.subf %140, %139 : vector<16x128xf32>
    %142 = math.exp %141 : vector<16x128xf32>
    %cst_46 = arith.constant 1.000000e+00 : f32
    %143 = vector.broadcast %cst_46 : f32 to vector<16x128xf32>
    %144 = arith.addf %143, %142 : vector<16x128xf32>
    %145 = math.log %144 : vector<16x128xf32>
    %146 = arith.addf %138, %145 : vector<16x128xf32>
    %147 = arith.mulf %24, %132 : vector<16x128xf32>
    %148 = math.exp %147 : vector<16x128xf32>
    %149 = arith.addf %146, %148 : vector<16x128xf32>
    %cst_47 = arith.constant 9.99999997E-7 : f32
    %150 = vector.broadcast %cst_47 : f32 to vector<16x128xf32>
    %151 = arith.addf %149, %150 : vector<16x128xf32>
    %152 = tpu.reciprocal %151 {approx = true} : vector<16x128xf32> -> vector<16x128xf32>
    %153 = arith.mulf %51, %152 : vector<16x128xf32>
    %154 = arith.addf %129, %153 : vector<16x128xf32>
    %c126_i32 = arith.constant 126 : i32
    %155 = tpu.dynamic_rotate %56 by %c126_i32 dim 1 : vector<16x128xf32>, i32 -> vector<16x128xf32>
    %c126_i32_48 = arith.constant 126 : i32
    %156 = tpu.dynamic_rotate %57 by %c126_i32_48 dim 1 : vector<16x128xf32>, i32 -> vector<16x128xf32>
    %c126_i32_49 = arith.constant 126 : i32
    %157 = tpu.dynamic_rotate %58 by %c126_i32_49 dim 1 : vector<16x128xf32>, i32 -> vector<16x128xf32>
    %158 = arith.mulf %1, %155 : vector<16x128xf32>
    %159 = arith.mulf %3, %156 : vector<16x128xf32>
    %cst_50 = arith.constant 0.000000e+00 : f32
    %160 = vector.broadcast %cst_50 : f32 to vector<16x128xf32>
    %161 = arith.maximumf %158, %160 : vector<16x128xf32>
    %162 = arith.mulf %158, %159 : vector<16x128xf32>
    %163 = arith.subf %161, %162 : vector<16x128xf32>
    %164 = math.absf %158 : vector<16x128xf32>
    %cst_51 = arith.constant 0.000000e+00 : f32
    %165 = vector.broadcast %cst_51 : f32 to vector<16x128xf32>
    %166 = arith.subf %165, %164 : vector<16x128xf32>
    %167 = math.exp %166 : vector<16x128xf32>
    %cst_52 = arith.constant 1.000000e+00 : f32
    %168 = vector.broadcast %cst_52 : f32 to vector<16x128xf32>
    %169 = arith.addf %168, %167 : vector<16x128xf32>
    %170 = math.log %169 : vector<16x128xf32>
    %171 = arith.addf %163, %170 : vector<16x128xf32>
    %172 = arith.mulf %24, %157 : vector<16x128xf32>
    %173 = math.exp %172 : vector<16x128xf32>
    %174 = arith.addf %171, %173 : vector<16x128xf32>
    %cst_53 = arith.constant 9.99999997E-7 : f32
    %175 = vector.broadcast %cst_53 : f32 to vector<16x128xf32>
    %176 = arith.addf %174, %175 : vector<16x128xf32>
    %177 = tpu.reciprocal %176 {approx = true} : vector<16x128xf32> -> vector<16x128xf32>
    %178 = arith.mulf %54, %177 : vector<16x128xf32>
    %179 = arith.addf %154, %178 : vector<16x128xf32>
    %180 = vector.broadcast %26 : vector<16x1xf32> to vector<16x128xf32>
    %181 = arith.mulf %180, %179 : vector<16x128xf32>
    %182 = arith.addf %55, %181 : vector<16x128xf32>
    %c1_i32_54 = arith.constant 1 : i32
    %183 = tpu.dynamic_rotate %1 by %c1_i32_54 dim 0 : vector<16x128xf32>, i32 -> vector<16x128xf32>
    %c1_i32_55 = arith.constant 1 : i32
    %184 = tpu.dynamic_rotate %3 by %c1_i32_55 dim 0 : vector<16x128xf32>, i32 -> vector<16x128xf32>
    %c1_i32_56 = arith.constant 1 : i32
    %185 = tpu.dynamic_rotate %22 by %c1_i32_56 dim 0 : vector<16x128xf32>, i32 -> vector<16x128xf32>
    %c2_i32_57 = arith.constant 2 : i32
    %186 = tpu.dynamic_rotate %183 by %c2_i32_57 dim 1 : vector<16x128xf32>, i32 -> vector<16x128xf32>
    %c2_i32_58 = arith.constant 2 : i32
    %187 = tpu.dynamic_rotate %184 by %c2_i32_58 dim 1 : vector<16x128xf32>, i32 -> vector<16x128xf32>
    %c2_i32_59 = arith.constant 2 : i32
    %188 = tpu.dynamic_rotate %185 by %c2_i32_59 dim 1 : vector<16x128xf32>, i32 -> vector<16x128xf32>
    %189 = arith.mulf %1, %186 : vector<16x128xf32>
    %190 = arith.mulf %3, %187 : vector<16x128xf32>
    %cst_60 = arith.constant 0.000000e+00 : f32
    %191 = vector.broadcast %cst_60 : f32 to vector<16x128xf32>
    %192 = arith.maximumf %189, %191 : vector<16x128xf32>
    %193 = arith.mulf %189, %190 : vector<16x128xf32>
    %194 = arith.subf %192, %193 : vector<16x128xf32>
    %195 = math.absf %189 : vector<16x128xf32>
    %cst_61 = arith.constant 0.000000e+00 : f32
    %196 = vector.broadcast %cst_61 : f32 to vector<16x128xf32>
    %197 = arith.subf %196, %195 : vector<16x128xf32>
    %198 = math.exp %197 : vector<16x128xf32>
    %cst_62 = arith.constant 1.000000e+00 : f32
    %199 = vector.broadcast %cst_62 : f32 to vector<16x128xf32>
    %200 = arith.addf %199, %198 : vector<16x128xf32>
    %201 = math.log %200 : vector<16x128xf32>
    %202 = arith.addf %194, %201 : vector<16x128xf32>
    %203 = arith.mulf %24, %188 : vector<16x128xf32>
    %204 = math.exp %203 : vector<16x128xf32>
    %205 = arith.addf %202, %204 : vector<16x128xf32>
    %cst_63 = arith.constant 9.99999997E-7 : f32
    %206 = vector.broadcast %cst_63 : f32 to vector<16x128xf32>
    %207 = arith.addf %205, %206 : vector<16x128xf32>
    %208 = tpu.reciprocal %207 {approx = true} : vector<16x128xf32> -> vector<16x128xf32>
    %209 = arith.mulf %33, %208 : vector<16x128xf32>
    %c1_i32_64 = arith.constant 1 : i32
    %210 = tpu.dynamic_rotate %183 by %c1_i32_64 dim 1 : vector<16x128xf32>, i32 -> vector<16x128xf32>
    %c1_i32_65 = arith.constant 1 : i32
    %211 = tpu.dynamic_rotate %184 by %c1_i32_65 dim 1 : vector<16x128xf32>, i32 -> vector<16x128xf32>
    %c1_i32_66 = arith.constant 1 : i32
    %212 = tpu.dynamic_rotate %185 by %c1_i32_66 dim 1 : vector<16x128xf32>, i32 -> vector<16x128xf32>
    %213 = arith.mulf %1, %210 : vector<16x128xf32>
    %214 = arith.mulf %3, %211 : vector<16x128xf32>
    %cst_67 = arith.constant 0.000000e+00 : f32
    %215 = vector.broadcast %cst_67 : f32 to vector<16x128xf32>
    %216 = arith.maximumf %213, %215 : vector<16x128xf32>
    %217 = arith.mulf %213, %214 : vector<16x128xf32>
    %218 = arith.subf %216, %217 : vector<16x128xf32>
    %219 = math.absf %213 : vector<16x128xf32>
    %cst_68 = arith.constant 0.000000e+00 : f32
    %220 = vector.broadcast %cst_68 : f32 to vector<16x128xf32>
    %221 = arith.subf %220, %219 : vector<16x128xf32>
    %222 = math.exp %221 : vector<16x128xf32>
    %cst_69 = arith.constant 1.000000e+00 : f32
    %223 = vector.broadcast %cst_69 : f32 to vector<16x128xf32>
    %224 = arith.addf %223, %222 : vector<16x128xf32>
    %225 = math.log %224 : vector<16x128xf32>
    %226 = arith.addf %218, %225 : vector<16x128xf32>
    %227 = arith.mulf %24, %212 : vector<16x128xf32>
    %228 = math.exp %227 : vector<16x128xf32>
    %229 = arith.addf %226, %228 : vector<16x128xf32>
    %cst_70 = arith.constant 9.99999997E-7 : f32
    %230 = vector.broadcast %cst_70 : f32 to vector<16x128xf32>
    %231 = arith.addf %229, %230 : vector<16x128xf32>
    %232 = tpu.reciprocal %231 {approx = true} : vector<16x128xf32> -> vector<16x128xf32>
    %233 = arith.mulf %36, %232 : vector<16x128xf32>
    %234 = arith.addf %209, %233 : vector<16x128xf32>
    %235 = arith.mulf %1, %183 : vector<16x128xf32>
    %236 = arith.mulf %3, %184 : vector<16x128xf32>
    %cst_71 = arith.constant 0.000000e+00 : f32
    %237 = vector.broadcast %cst_71 : f32 to vector<16x128xf32>
    %238 = arith.maximumf %235, %237 : vector<16x128xf32>
    %239 = arith.mulf %235, %236 : vector<16x128xf32>
    %240 = arith.subf %238, %239 : vector<16x128xf32>
    %241 = math.absf %235 : vector<16x128xf32>
    %cst_72 = arith.constant 0.000000e+00 : f32
    %242 = vector.broadcast %cst_72 : f32 to vector<16x128xf32>
    %243 = arith.subf %242, %241 : vector<16x128xf32>
    %244 = math.exp %243 : vector<16x128xf32>
    %cst_73 = arith.constant 1.000000e+00 : f32
    %245 = vector.broadcast %cst_73 : f32 to vector<16x128xf32>
    %246 = arith.addf %245, %244 : vector<16x128xf32>
    %247 = math.log %246 : vector<16x128xf32>
    %248 = arith.addf %240, %247 : vector<16x128xf32>
    %249 = arith.mulf %24, %185 : vector<16x128xf32>
    %250 = math.exp %249 : vector<16x128xf32>
    %251 = arith.addf %248, %250 : vector<16x128xf32>
    %cst_74 = arith.constant 9.99999997E-7 : f32
    %252 = vector.broadcast %cst_74 : f32 to vector<16x128xf32>
    %253 = arith.addf %251, %252 : vector<16x128xf32>
    %254 = tpu.reciprocal %253 {approx = true} : vector<16x128xf32> -> vector<16x128xf32>
    %255 = arith.mulf %42, %254 : vector<16x128xf32>
    %256 = arith.addf %234, %255 : vector<16x128xf32>
    %c127_i32_75 = arith.constant 127 : i32
    %257 = tpu.dynamic_rotate %183 by %c127_i32_75 dim 1 : vector<16x128xf32>, i32 -> vector<16x128xf32>
    %c127_i32_76 = arith.constant 127 : i32
    %258 = tpu.dynamic_rotate %184 by %c127_i32_76 dim 1 : vector<16x128xf32>, i32 -> vector<16x128xf32>
    %c127_i32_77 = arith.constant 127 : i32
    %259 = tpu.dynamic_rotate %185 by %c127_i32_77 dim 1 : vector<16x128xf32>, i32 -> vector<16x128xf32>
    %260 = arith.mulf %1, %257 : vector<16x128xf32>
    %261 = arith.mulf %3, %258 : vector<16x128xf32>
    %cst_78 = arith.constant 0.000000e+00 : f32
    %262 = vector.broadcast %cst_78 : f32 to vector<16x128xf32>
    %263 = arith.maximumf %260, %262 : vector<16x128xf32>
    %264 = arith.mulf %260, %261 : vector<16x128xf32>
    %265 = arith.subf %263, %264 : vector<16x128xf32>
    %266 = math.absf %260 : vector<16x128xf32>
    %cst_79 = arith.constant 0.000000e+00 : f32
    %267 = vector.broadcast %cst_79 : f32 to vector<16x128xf32>
    %268 = arith.subf %267, %266 : vector<16x128xf32>
    %269 = math.exp %268 : vector<16x128xf32>
    %cst_80 = arith.constant 1.000000e+00 : f32
    %270 = vector.broadcast %cst_80 : f32 to vector<16x128xf32>
    %271 = arith.addf %270, %269 : vector<16x128xf32>
    %272 = math.log %271 : vector<16x128xf32>
    %273 = arith.addf %265, %272 : vector<16x128xf32>
    %274 = arith.mulf %24, %259 : vector<16x128xf32>
    %275 = math.exp %274 : vector<16x128xf32>
    %276 = arith.addf %273, %275 : vector<16x128xf32>
    %cst_81 = arith.constant 9.99999997E-7 : f32
    %277 = vector.broadcast %cst_81 : f32 to vector<16x128xf32>
    %278 = arith.addf %276, %277 : vector<16x128xf32>
    %279 = tpu.reciprocal %278 {approx = true} : vector<16x128xf32> -> vector<16x128xf32>
    %280 = arith.mulf %48, %279 : vector<16x128xf32>
    %281 = arith.addf %256, %280 : vector<16x128xf32>
    %c126_i32_82 = arith.constant 126 : i32
    %282 = tpu.dynamic_rotate %183 by %c126_i32_82 dim 1 : vector<16x128xf32>, i32 -> vector<16x128xf32>
    %c126_i32_83 = arith.constant 126 : i32
    %283 = tpu.dynamic_rotate %184 by %c126_i32_83 dim 1 : vector<16x128xf32>, i32 -> vector<16x128xf32>
    %c126_i32_84 = arith.constant 126 : i32
    %284 = tpu.dynamic_rotate %185 by %c126_i32_84 dim 1 : vector<16x128xf32>, i32 -> vector<16x128xf32>
    %285 = arith.mulf %1, %282 : vector<16x128xf32>
    %286 = arith.mulf %3, %283 : vector<16x128xf32>
    %cst_85 = arith.constant 0.000000e+00 : f32
    %287 = vector.broadcast %cst_85 : f32 to vector<16x128xf32>
    %288 = arith.maximumf %285, %287 : vector<16x128xf32>
    %289 = arith.mulf %285, %286 : vector<16x128xf32>
    %290 = arith.subf %288, %289 : vector<16x128xf32>
    %291 = math.absf %285 : vector<16x128xf32>
    %cst_86 = arith.constant 0.000000e+00 : f32
    %292 = vector.broadcast %cst_86 : f32 to vector<16x128xf32>
    %293 = arith.subf %292, %291 : vector<16x128xf32>
    %294 = math.exp %293 : vector<16x128xf32>
    %cst_87 = arith.constant 1.000000e+00 : f32
    %295 = vector.broadcast %cst_87 : f32 to vector<16x128xf32>
    %296 = arith.addf %295, %294 : vector<16x128xf32>
    %297 = math.log %296 : vector<16x128xf32>
    %298 = arith.addf %290, %297 : vector<16x128xf32>
    %299 = arith.mulf %24, %284 : vector<16x128xf32>
    %300 = math.exp %299 : vector<16x128xf32>
    %301 = arith.addf %298, %300 : vector<16x128xf32>
    %cst_88 = arith.constant 9.99999997E-7 : f32
    %302 = vector.broadcast %cst_88 : f32 to vector<16x128xf32>
    %303 = arith.addf %301, %302 : vector<16x128xf32>
    %304 = tpu.reciprocal %303 {approx = true} : vector<16x128xf32> -> vector<16x128xf32>
    %305 = arith.mulf %54, %304 : vector<16x128xf32>
    %306 = arith.addf %281, %305 : vector<16x128xf32>
    %307 = vector.broadcast %27 : vector<16x1xf32> to vector<16x128xf32>
    %308 = arith.mulf %307, %306 : vector<16x128xf32>
    %309 = arith.addf %182, %308 : vector<16x128xf32>
    %c2_i32_89 = arith.constant 2 : i32
    %310 = tpu.dynamic_rotate %1 by %c2_i32_89 dim 1 : vector<16x128xf32>, i32 -> vector<16x128xf32>
    %c2_i32_90 = arith.constant 2 : i32
    %311 = tpu.dynamic_rotate %3 by %c2_i32_90 dim 1 : vector<16x128xf32>, i32 -> vector<16x128xf32>
    %c2_i32_91 = arith.constant 2 : i32
    %312 = tpu.dynamic_rotate %22 by %c2_i32_91 dim 1 : vector<16x128xf32>, i32 -> vector<16x128xf32>
    %313 = arith.mulf %1, %310 : vector<16x128xf32>
    %314 = arith.mulf %3, %311 : vector<16x128xf32>
    %cst_92 = arith.constant 0.000000e+00 : f32
    %315 = vector.broadcast %cst_92 : f32 to vector<16x128xf32>
    %316 = arith.maximumf %313, %315 : vector<16x128xf32>
    %317 = arith.mulf %313, %314 : vector<16x128xf32>
    %318 = arith.subf %316, %317 : vector<16x128xf32>
    %319 = math.absf %313 : vector<16x128xf32>
    %cst_93 = arith.constant 0.000000e+00 : f32
    %320 = vector.broadcast %cst_93 : f32 to vector<16x128xf32>
    %321 = arith.subf %320, %319 : vector<16x128xf32>
    %322 = math.exp %321 : vector<16x128xf32>
    %cst_94 = arith.constant 1.000000e+00 : f32
    %323 = vector.broadcast %cst_94 : f32 to vector<16x128xf32>
    %324 = arith.addf %323, %322 : vector<16x128xf32>
    %325 = math.log %324 : vector<16x128xf32>
    %326 = arith.addf %318, %325 : vector<16x128xf32>
    %327 = arith.mulf %24, %312 : vector<16x128xf32>
    %328 = math.exp %327 : vector<16x128xf32>
    %329 = arith.addf %326, %328 : vector<16x128xf32>
    %cst_95 = arith.constant 9.99999997E-7 : f32
    %330 = vector.broadcast %cst_95 : f32 to vector<16x128xf32>
    %331 = arith.addf %329, %330 : vector<16x128xf32>
    %332 = tpu.reciprocal %331 {approx = true} : vector<16x128xf32> -> vector<16x128xf32>
    %333 = arith.mulf %33, %332 : vector<16x128xf32>
    %c1_i32_96 = arith.constant 1 : i32
    %334 = tpu.dynamic_rotate %1 by %c1_i32_96 dim 1 : vector<16x128xf32>, i32 -> vector<16x128xf32>
    %c1_i32_97 = arith.constant 1 : i32
    %335 = tpu.dynamic_rotate %3 by %c1_i32_97 dim 1 : vector<16x128xf32>, i32 -> vector<16x128xf32>
    %c1_i32_98 = arith.constant 1 : i32
    %336 = tpu.dynamic_rotate %22 by %c1_i32_98 dim 1 : vector<16x128xf32>, i32 -> vector<16x128xf32>
    %337 = arith.mulf %1, %334 : vector<16x128xf32>
    %338 = arith.mulf %3, %335 : vector<16x128xf32>
    %cst_99 = arith.constant 0.000000e+00 : f32
    %339 = vector.broadcast %cst_99 : f32 to vector<16x128xf32>
    %340 = arith.maximumf %337, %339 : vector<16x128xf32>
    %341 = arith.mulf %337, %338 : vector<16x128xf32>
    %342 = arith.subf %340, %341 : vector<16x128xf32>
    %343 = math.absf %337 : vector<16x128xf32>
    %cst_100 = arith.constant 0.000000e+00 : f32
    %344 = vector.broadcast %cst_100 : f32 to vector<16x128xf32>
    %345 = arith.subf %344, %343 : vector<16x128xf32>
    %346 = math.exp %345 : vector<16x128xf32>
    %cst_101 = arith.constant 1.000000e+00 : f32
    %347 = vector.broadcast %cst_101 : f32 to vector<16x128xf32>
    %348 = arith.addf %347, %346 : vector<16x128xf32>
    %349 = math.log %348 : vector<16x128xf32>
    %350 = arith.addf %342, %349 : vector<16x128xf32>
    %351 = arith.mulf %24, %336 : vector<16x128xf32>
    %352 = math.exp %351 : vector<16x128xf32>
    %353 = arith.addf %350, %352 : vector<16x128xf32>
    %cst_102 = arith.constant 9.99999997E-7 : f32
    %354 = vector.broadcast %cst_102 : f32 to vector<16x128xf32>
    %355 = arith.addf %353, %354 : vector<16x128xf32>
    %356 = tpu.reciprocal %355 {approx = true} : vector<16x128xf32> -> vector<16x128xf32>
    %357 = arith.mulf %36, %356 : vector<16x128xf32>
    %358 = arith.addf %333, %357 : vector<16x128xf32>
    %359 = arith.mulf %1, %1 : vector<16x128xf32>
    %360 = arith.mulf %3, %3 : vector<16x128xf32>
    %cst_103 = arith.constant 0.000000e+00 : f32
    %361 = vector.broadcast %cst_103 : f32 to vector<16x128xf32>
    %362 = arith.maximumf %359, %361 : vector<16x128xf32>
    %363 = arith.mulf %359, %360 : vector<16x128xf32>
    %364 = arith.subf %362, %363 : vector<16x128xf32>
    %365 = math.absf %359 : vector<16x128xf32>
    %cst_104 = arith.constant 0.000000e+00 : f32
    %366 = vector.broadcast %cst_104 : f32 to vector<16x128xf32>
    %367 = arith.subf %366, %365 : vector<16x128xf32>
    %368 = math.exp %367 : vector<16x128xf32>
    %cst_105 = arith.constant 1.000000e+00 : f32
    %369 = vector.broadcast %cst_105 : f32 to vector<16x128xf32>
    %370 = arith.addf %369, %368 : vector<16x128xf32>
    %371 = math.log %370 : vector<16x128xf32>
    %372 = arith.addf %364, %371 : vector<16x128xf32>
    %373 = arith.mulf %24, %22 : vector<16x128xf32>
    %374 = math.exp %373 : vector<16x128xf32>
    %375 = arith.addf %372, %374 : vector<16x128xf32>
    %cst_106 = arith.constant 9.99999997E-7 : f32
    %376 = vector.broadcast %cst_106 : f32 to vector<16x128xf32>
    %377 = arith.addf %375, %376 : vector<16x128xf32>
    %378 = tpu.reciprocal %377 {approx = true} : vector<16x128xf32> -> vector<16x128xf32>
    %379 = arith.mulf %42, %378 : vector<16x128xf32>
    %380 = arith.addf %358, %379 : vector<16x128xf32>
    %c127_i32_107 = arith.constant 127 : i32
    %381 = tpu.dynamic_rotate %1 by %c127_i32_107 dim 1 : vector<16x128xf32>, i32 -> vector<16x128xf32>
    %c127_i32_108 = arith.constant 127 : i32
    %382 = tpu.dynamic_rotate %3 by %c127_i32_108 dim 1 : vector<16x128xf32>, i32 -> vector<16x128xf32>
    %c127_i32_109 = arith.constant 127 : i32
    %383 = tpu.dynamic_rotate %22 by %c127_i32_109 dim 1 : vector<16x128xf32>, i32 -> vector<16x128xf32>
    %384 = arith.mulf %1, %381 : vector<16x128xf32>
    %385 = arith.mulf %3, %382 : vector<16x128xf32>
    %cst_110 = arith.constant 0.000000e+00 : f32
    %386 = vector.broadcast %cst_110 : f32 to vector<16x128xf32>
    %387 = arith.maximumf %384, %386 : vector<16x128xf32>
    %388 = arith.mulf %384, %385 : vector<16x128xf32>
    %389 = arith.subf %387, %388 : vector<16x128xf32>
    %390 = math.absf %384 : vector<16x128xf32>
    %cst_111 = arith.constant 0.000000e+00 : f32
    %391 = vector.broadcast %cst_111 : f32 to vector<16x128xf32>
    %392 = arith.subf %391, %390 : vector<16x128xf32>
    %393 = math.exp %392 : vector<16x128xf32>
    %cst_112 = arith.constant 1.000000e+00 : f32
    %394 = vector.broadcast %cst_112 : f32 to vector<16x128xf32>
    %395 = arith.addf %394, %393 : vector<16x128xf32>
    %396 = math.log %395 : vector<16x128xf32>
    %397 = arith.addf %389, %396 : vector<16x128xf32>
    %398 = arith.mulf %24, %383 : vector<16x128xf32>
    %399 = math.exp %398 : vector<16x128xf32>
    %400 = arith.addf %397, %399 : vector<16x128xf32>
    %cst_113 = arith.constant 9.99999997E-7 : f32
    %401 = vector.broadcast %cst_113 : f32 to vector<16x128xf32>
    %402 = arith.addf %400, %401 : vector<16x128xf32>
    %403 = tpu.reciprocal %402 {approx = true} : vector<16x128xf32> -> vector<16x128xf32>
    %404 = arith.mulf %48, %403 : vector<16x128xf32>
    %405 = arith.addf %380, %404 : vector<16x128xf32>
    %c126_i32_114 = arith.constant 126 : i32
    %406 = tpu.dynamic_rotate %1 by %c126_i32_114 dim 1 : vector<16x128xf32>, i32 -> vector<16x128xf32>
    %c126_i32_115 = arith.constant 126 : i32
    %407 = tpu.dynamic_rotate %3 by %c126_i32_115 dim 1 : vector<16x128xf32>, i32 -> vector<16x128xf32>
    %c126_i32_116 = arith.constant 126 : i32
    %408 = tpu.dynamic_rotate %22 by %c126_i32_116 dim 1 : vector<16x128xf32>, i32 -> vector<16x128xf32>
    %409 = arith.mulf %1, %406 : vector<16x128xf32>
    %410 = arith.mulf %3, %407 : vector<16x128xf32>
    %cst_117 = arith.constant 0.000000e+00 : f32
    %411 = vector.broadcast %cst_117 : f32 to vector<16x128xf32>
    %412 = arith.maximumf %409, %411 : vector<16x128xf32>
    %413 = arith.mulf %409, %410 : vector<16x128xf32>
    %414 = arith.subf %412, %413 : vector<16x128xf32>
    %415 = math.absf %409 : vector<16x128xf32>
    %cst_118 = arith.constant 0.000000e+00 : f32
    %416 = vector.broadcast %cst_118 : f32 to vector<16x128xf32>
    %417 = arith.subf %416, %415 : vector<16x128xf32>
    %418 = math.exp %417 : vector<16x128xf32>
    %cst_119 = arith.constant 1.000000e+00 : f32
    %419 = vector.broadcast %cst_119 : f32 to vector<16x128xf32>
    %420 = arith.addf %419, %418 : vector<16x128xf32>
    %421 = math.log %420 : vector<16x128xf32>
    %422 = arith.addf %414, %421 : vector<16x128xf32>
    %423 = arith.mulf %24, %408 : vector<16x128xf32>
    %424 = math.exp %423 : vector<16x128xf32>
    %425 = arith.addf %422, %424 : vector<16x128xf32>
    %cst_120 = arith.constant 9.99999997E-7 : f32
    %426 = vector.broadcast %cst_120 : f32 to vector<16x128xf32>
    %427 = arith.addf %425, %426 : vector<16x128xf32>
    %428 = tpu.reciprocal %427 {approx = true} : vector<16x128xf32> -> vector<16x128xf32>
    %429 = arith.mulf %54, %428 : vector<16x128xf32>
    %430 = arith.addf %405, %429 : vector<16x128xf32>
    %431 = vector.broadcast %28 : vector<16x1xf32> to vector<16x128xf32>
    %432 = arith.mulf %431, %430 : vector<16x128xf32>
    %433 = arith.addf %309, %432 : vector<16x128xf32>
    %c15_i32 = arith.constant 15 : i32
    %434 = tpu.dynamic_rotate %1 by %c15_i32 dim 0 : vector<16x128xf32>, i32 -> vector<16x128xf32>
    %c15_i32_121 = arith.constant 15 : i32
    %435 = tpu.dynamic_rotate %3 by %c15_i32_121 dim 0 : vector<16x128xf32>, i32 -> vector<16x128xf32>
    %c15_i32_122 = arith.constant 15 : i32
    %436 = tpu.dynamic_rotate %22 by %c15_i32_122 dim 0 : vector<16x128xf32>, i32 -> vector<16x128xf32>
    %c2_i32_123 = arith.constant 2 : i32
    %437 = tpu.dynamic_rotate %434 by %c2_i32_123 dim 1 : vector<16x128xf32>, i32 -> vector<16x128xf32>
    %c2_i32_124 = arith.constant 2 : i32
    %438 = tpu.dynamic_rotate %435 by %c2_i32_124 dim 1 : vector<16x128xf32>, i32 -> vector<16x128xf32>
    %c2_i32_125 = arith.constant 2 : i32
    %439 = tpu.dynamic_rotate %436 by %c2_i32_125 dim 1 : vector<16x128xf32>, i32 -> vector<16x128xf32>
    %440 = arith.mulf %1, %437 : vector<16x128xf32>
    %441 = arith.mulf %3, %438 : vector<16x128xf32>
    %cst_126 = arith.constant 0.000000e+00 : f32
    %442 = vector.broadcast %cst_126 : f32 to vector<16x128xf32>
    %443 = arith.maximumf %440, %442 : vector<16x128xf32>
    %444 = arith.mulf %440, %441 : vector<16x128xf32>
    %445 = arith.subf %443, %444 : vector<16x128xf32>
    %446 = math.absf %440 : vector<16x128xf32>
    %cst_127 = arith.constant 0.000000e+00 : f32
    %447 = vector.broadcast %cst_127 : f32 to vector<16x128xf32>
    %448 = arith.subf %447, %446 : vector<16x128xf32>
    %449 = math.exp %448 : vector<16x128xf32>
    %cst_128 = arith.constant 1.000000e+00 : f32
    %450 = vector.broadcast %cst_128 : f32 to vector<16x128xf32>
    %451 = arith.addf %450, %449 : vector<16x128xf32>
    %452 = math.log %451 : vector<16x128xf32>
    %453 = arith.addf %445, %452 : vector<16x128xf32>
    %454 = arith.mulf %24, %439 : vector<16x128xf32>
    %455 = math.exp %454 : vector<16x128xf32>
    %456 = arith.addf %453, %455 : vector<16x128xf32>
    %cst_129 = arith.constant 9.99999997E-7 : f32
    %457 = vector.broadcast %cst_129 : f32 to vector<16x128xf32>
    %458 = arith.addf %456, %457 : vector<16x128xf32>
    %459 = tpu.reciprocal %458 {approx = true} : vector<16x128xf32> -> vector<16x128xf32>
    %460 = arith.mulf %33, %459 : vector<16x128xf32>
    %c1_i32_130 = arith.constant 1 : i32
    %461 = tpu.dynamic_rotate %434 by %c1_i32_130 dim 1 : vector<16x128xf32>, i32 -> vector<16x128xf32>
    %c1_i32_131 = arith.constant 1 : i32
    %462 = tpu.dynamic_rotate %435 by %c1_i32_131 dim 1 : vector<16x128xf32>, i32 -> vector<16x128xf32>
    %c1_i32_132 = arith.constant 1 : i32
    %463 = tpu.dynamic_rotate %436 by %c1_i32_132 dim 1 : vector<16x128xf32>, i32 -> vector<16x128xf32>
    %464 = arith.mulf %1, %461 : vector<16x128xf32>
    %465 = arith.mulf %3, %462 : vector<16x128xf32>
    %cst_133 = arith.constant 0.000000e+00 : f32
    %466 = vector.broadcast %cst_133 : f32 to vector<16x128xf32>
    %467 = arith.maximumf %464, %466 : vector<16x128xf32>
    %468 = arith.mulf %464, %465 : vector<16x128xf32>
    %469 = arith.subf %467, %468 : vector<16x128xf32>
    %470 = math.absf %464 : vector<16x128xf32>
    %cst_134 = arith.constant 0.000000e+00 : f32
    %471 = vector.broadcast %cst_134 : f32 to vector<16x128xf32>
    %472 = arith.subf %471, %470 : vector<16x128xf32>
    %473 = math.exp %472 : vector<16x128xf32>
    %cst_135 = arith.constant 1.000000e+00 : f32
    %474 = vector.broadcast %cst_135 : f32 to vector<16x128xf32>
    %475 = arith.addf %474, %473 : vector<16x128xf32>
    %476 = math.log %475 : vector<16x128xf32>
    %477 = arith.addf %469, %476 : vector<16x128xf32>
    %478 = arith.mulf %24, %463 : vector<16x128xf32>
    %479 = math.exp %478 : vector<16x128xf32>
    %480 = arith.addf %477, %479 : vector<16x128xf32>
    %cst_136 = arith.constant 9.99999997E-7 : f32
    %481 = vector.broadcast %cst_136 : f32 to vector<16x128xf32>
    %482 = arith.addf %480, %481 : vector<16x128xf32>
    %483 = tpu.reciprocal %482 {approx = true} : vector<16x128xf32> -> vector<16x128xf32>
    %484 = arith.mulf %36, %483 : vector<16x128xf32>
    %485 = arith.addf %460, %484 : vector<16x128xf32>
    %486 = arith.mulf %1, %434 : vector<16x128xf32>
    %487 = arith.mulf %3, %435 : vector<16x128xf32>
    %cst_137 = arith.constant 0.000000e+00 : f32
    %488 = vector.broadcast %cst_137 : f32 to vector<16x128xf32>
    %489 = arith.maximumf %486, %488 : vector<16x128xf32>
    %490 = arith.mulf %486, %487 : vector<16x128xf32>
    %491 = arith.subf %489, %490 : vector<16x128xf32>
    %492 = math.absf %486 : vector<16x128xf32>
    %cst_138 = arith.constant 0.000000e+00 : f32
    %493 = vector.broadcast %cst_138 : f32 to vector<16x128xf32>
    %494 = arith.subf %493, %492 : vector<16x128xf32>
    %495 = math.exp %494 : vector<16x128xf32>
    %cst_139 = arith.constant 1.000000e+00 : f32
    %496 = vector.broadcast %cst_139 : f32 to vector<16x128xf32>
    %497 = arith.addf %496, %495 : vector<16x128xf32>
    %498 = math.log %497 : vector<16x128xf32>
    %499 = arith.addf %491, %498 : vector<16x128xf32>
    %500 = arith.mulf %24, %436 : vector<16x128xf32>
    %501 = math.exp %500 : vector<16x128xf32>
    %502 = arith.addf %499, %501 : vector<16x128xf32>
    %cst_140 = arith.constant 9.99999997E-7 : f32
    %503 = vector.broadcast %cst_140 : f32 to vector<16x128xf32>
    %504 = arith.addf %502, %503 : vector<16x128xf32>
    %505 = tpu.reciprocal %504 {approx = true} : vector<16x128xf32> -> vector<16x128xf32>
    %506 = arith.mulf %42, %505 : vector<16x128xf32>
    %507 = arith.addf %485, %506 : vector<16x128xf32>
    %c127_i32_141 = arith.constant 127 : i32
    %508 = tpu.dynamic_rotate %434 by %c127_i32_141 dim 1 : vector<16x128xf32>, i32 -> vector<16x128xf32>
    %c127_i32_142 = arith.constant 127 : i32
    %509 = tpu.dynamic_rotate %435 by %c127_i32_142 dim 1 : vector<16x128xf32>, i32 -> vector<16x128xf32>
    %c127_i32_143 = arith.constant 127 : i32
    %510 = tpu.dynamic_rotate %436 by %c127_i32_143 dim 1 : vector<16x128xf32>, i32 -> vector<16x128xf32>
    %511 = arith.mulf %1, %508 : vector<16x128xf32>
    %512 = arith.mulf %3, %509 : vector<16x128xf32>
    %cst_144 = arith.constant 0.000000e+00 : f32
    %513 = vector.broadcast %cst_144 : f32 to vector<16x128xf32>
    %514 = arith.maximumf %511, %513 : vector<16x128xf32>
    %515 = arith.mulf %511, %512 : vector<16x128xf32>
    %516 = arith.subf %514, %515 : vector<16x128xf32>
    %517 = math.absf %511 : vector<16x128xf32>
    %cst_145 = arith.constant 0.000000e+00 : f32
    %518 = vector.broadcast %cst_145 : f32 to vector<16x128xf32>
    %519 = arith.subf %518, %517 : vector<16x128xf32>
    %520 = math.exp %519 : vector<16x128xf32>
    %cst_146 = arith.constant 1.000000e+00 : f32
    %521 = vector.broadcast %cst_146 : f32 to vector<16x128xf32>
    %522 = arith.addf %521, %520 : vector<16x128xf32>
    %523 = math.log %522 : vector<16x128xf32>
    %524 = arith.addf %516, %523 : vector<16x128xf32>
    %525 = arith.mulf %24, %510 : vector<16x128xf32>
    %526 = math.exp %525 : vector<16x128xf32>
    %527 = arith.addf %524, %526 : vector<16x128xf32>
    %cst_147 = arith.constant 9.99999997E-7 : f32
    %528 = vector.broadcast %cst_147 : f32 to vector<16x128xf32>
    %529 = arith.addf %527, %528 : vector<16x128xf32>
    %530 = tpu.reciprocal %529 {approx = true} : vector<16x128xf32> -> vector<16x128xf32>
    %531 = arith.mulf %48, %530 : vector<16x128xf32>
    %532 = arith.addf %507, %531 : vector<16x128xf32>
    %c126_i32_148 = arith.constant 126 : i32
    %533 = tpu.dynamic_rotate %434 by %c126_i32_148 dim 1 : vector<16x128xf32>, i32 -> vector<16x128xf32>
    %c126_i32_149 = arith.constant 126 : i32
    %534 = tpu.dynamic_rotate %435 by %c126_i32_149 dim 1 : vector<16x128xf32>, i32 -> vector<16x128xf32>
    %c126_i32_150 = arith.constant 126 : i32
    %535 = tpu.dynamic_rotate %436 by %c126_i32_150 dim 1 : vector<16x128xf32>, i32 -> vector<16x128xf32>
    %536 = arith.mulf %1, %533 : vector<16x128xf32>
    %537 = arith.mulf %3, %534 : vector<16x128xf32>
    %cst_151 = arith.constant 0.000000e+00 : f32
    %538 = vector.broadcast %cst_151 : f32 to vector<16x128xf32>
    %539 = arith.maximumf %536, %538 : vector<16x128xf32>
    %540 = arith.mulf %536, %537 : vector<16x128xf32>
    %541 = arith.subf %539, %540 : vector<16x128xf32>
    %542 = math.absf %536 : vector<16x128xf32>
    %cst_152 = arith.constant 0.000000e+00 : f32
    %543 = vector.broadcast %cst_152 : f32 to vector<16x128xf32>
    %544 = arith.subf %543, %542 : vector<16x128xf32>
    %545 = math.exp %544 : vector<16x128xf32>
    %cst_153 = arith.constant 1.000000e+00 : f32
    %546 = vector.broadcast %cst_153 : f32 to vector<16x128xf32>
    %547 = arith.addf %546, %545 : vector<16x128xf32>
    %548 = math.log %547 : vector<16x128xf32>
    %549 = arith.addf %541, %548 : vector<16x128xf32>
    %550 = arith.mulf %24, %535 : vector<16x128xf32>
    %551 = math.exp %550 : vector<16x128xf32>
    %552 = arith.addf %549, %551 : vector<16x128xf32>
    %cst_154 = arith.constant 9.99999997E-7 : f32
    %553 = vector.broadcast %cst_154 : f32 to vector<16x128xf32>
    %554 = arith.addf %552, %553 : vector<16x128xf32>
    %555 = tpu.reciprocal %554 {approx = true} : vector<16x128xf32> -> vector<16x128xf32>
    %556 = arith.mulf %54, %555 : vector<16x128xf32>
    %557 = arith.addf %532, %556 : vector<16x128xf32>
    %558 = vector.broadcast %29 : vector<16x1xf32> to vector<16x128xf32>
    %559 = arith.mulf %558, %557 : vector<16x128xf32>
    %560 = arith.addf %433, %559 : vector<16x128xf32>
    %c14_i32 = arith.constant 14 : i32
    %561 = tpu.dynamic_rotate %1 by %c14_i32 dim 0 : vector<16x128xf32>, i32 -> vector<16x128xf32>
    %c14_i32_155 = arith.constant 14 : i32
    %562 = tpu.dynamic_rotate %3 by %c14_i32_155 dim 0 : vector<16x128xf32>, i32 -> vector<16x128xf32>
    %c14_i32_156 = arith.constant 14 : i32
    %563 = tpu.dynamic_rotate %22 by %c14_i32_156 dim 0 : vector<16x128xf32>, i32 -> vector<16x128xf32>
    %c2_i32_157 = arith.constant 2 : i32
    %564 = tpu.dynamic_rotate %561 by %c2_i32_157 dim 1 : vector<16x128xf32>, i32 -> vector<16x128xf32>
    %c2_i32_158 = arith.constant 2 : i32
    %565 = tpu.dynamic_rotate %562 by %c2_i32_158 dim 1 : vector<16x128xf32>, i32 -> vector<16x128xf32>
    %c2_i32_159 = arith.constant 2 : i32
    %566 = tpu.dynamic_rotate %563 by %c2_i32_159 dim 1 : vector<16x128xf32>, i32 -> vector<16x128xf32>
    %567 = arith.mulf %1, %564 : vector<16x128xf32>
    %568 = arith.mulf %3, %565 : vector<16x128xf32>
    %cst_160 = arith.constant 0.000000e+00 : f32
    %569 = vector.broadcast %cst_160 : f32 to vector<16x128xf32>
    %570 = arith.maximumf %567, %569 : vector<16x128xf32>
    %571 = arith.mulf %567, %568 : vector<16x128xf32>
    %572 = arith.subf %570, %571 : vector<16x128xf32>
    %573 = math.absf %567 : vector<16x128xf32>
    %cst_161 = arith.constant 0.000000e+00 : f32
    %574 = vector.broadcast %cst_161 : f32 to vector<16x128xf32>
    %575 = arith.subf %574, %573 : vector<16x128xf32>
    %576 = math.exp %575 : vector<16x128xf32>
    %cst_162 = arith.constant 1.000000e+00 : f32
    %577 = vector.broadcast %cst_162 : f32 to vector<16x128xf32>
    %578 = arith.addf %577, %576 : vector<16x128xf32>
    %579 = math.log %578 : vector<16x128xf32>
    %580 = arith.addf %572, %579 : vector<16x128xf32>
    %581 = arith.mulf %24, %566 : vector<16x128xf32>
    %582 = math.exp %581 : vector<16x128xf32>
    %583 = arith.addf %580, %582 : vector<16x128xf32>
    %cst_163 = arith.constant 9.99999997E-7 : f32
    %584 = vector.broadcast %cst_163 : f32 to vector<16x128xf32>
    %585 = arith.addf %583, %584 : vector<16x128xf32>
    %586 = tpu.reciprocal %585 {approx = true} : vector<16x128xf32> -> vector<16x128xf32>
    %587 = arith.mulf %33, %586 : vector<16x128xf32>
    %c1_i32_164 = arith.constant 1 : i32
    %588 = tpu.dynamic_rotate %561 by %c1_i32_164 dim 1 : vector<16x128xf32>, i32 -> vector<16x128xf32>
    %c1_i32_165 = arith.constant 1 : i32
    %589 = tpu.dynamic_rotate %562 by %c1_i32_165 dim 1 : vector<16x128xf32>, i32 -> vector<16x128xf32>
    %c1_i32_166 = arith.constant 1 : i32
    %590 = tpu.dynamic_rotate %563 by %c1_i32_166 dim 1 : vector<16x128xf32>, i32 -> vector<16x128xf32>
    %591 = arith.mulf %1, %588 : vector<16x128xf32>
    %592 = arith.mulf %3, %589 : vector<16x128xf32>
    %cst_167 = arith.constant 0.000000e+00 : f32
    %593 = vector.broadcast %cst_167 : f32 to vector<16x128xf32>
    %594 = arith.maximumf %591, %593 : vector<16x128xf32>
    %595 = arith.mulf %591, %592 : vector<16x128xf32>
    %596 = arith.subf %594, %595 : vector<16x128xf32>
    %597 = math.absf %591 : vector<16x128xf32>
    %cst_168 = arith.constant 0.000000e+00 : f32
    %598 = vector.broadcast %cst_168 : f32 to vector<16x128xf32>
    %599 = arith.subf %598, %597 : vector<16x128xf32>
    %600 = math.exp %599 : vector<16x128xf32>
    %cst_169 = arith.constant 1.000000e+00 : f32
    %601 = vector.broadcast %cst_169 : f32 to vector<16x128xf32>
    %602 = arith.addf %601, %600 : vector<16x128xf32>
    %603 = math.log %602 : vector<16x128xf32>
    %604 = arith.addf %596, %603 : vector<16x128xf32>
    %605 = arith.mulf %24, %590 : vector<16x128xf32>
    %606 = math.exp %605 : vector<16x128xf32>
    %607 = arith.addf %604, %606 : vector<16x128xf32>
    %cst_170 = arith.constant 9.99999997E-7 : f32
    %608 = vector.broadcast %cst_170 : f32 to vector<16x128xf32>
    %609 = arith.addf %607, %608 : vector<16x128xf32>
    %610 = tpu.reciprocal %609 {approx = true} : vector<16x128xf32> -> vector<16x128xf32>
    %611 = arith.mulf %39, %610 : vector<16x128xf32>
    %612 = arith.addf %587, %611 : vector<16x128xf32>
    %613 = arith.mulf %1, %561 : vector<16x128xf32>
    %614 = arith.mulf %3, %562 : vector<16x128xf32>
    %cst_171 = arith.constant 0.000000e+00 : f32
    %615 = vector.broadcast %cst_171 : f32 to vector<16x128xf32>
    %616 = arith.maximumf %613, %615 : vector<16x128xf32>
    %617 = arith.mulf %613, %614 : vector<16x128xf32>
    %618 = arith.subf %616, %617 : vector<16x128xf32>
    %619 = math.absf %613 : vector<16x128xf32>
    %cst_172 = arith.constant 0.000000e+00 : f32
    %620 = vector.broadcast %cst_172 : f32 to vector<16x128xf32>
    %621 = arith.subf %620, %619 : vector<16x128xf32>
    %622 = math.exp %621 : vector<16x128xf32>
    %cst_173 = arith.constant 1.000000e+00 : f32
    %623 = vector.broadcast %cst_173 : f32 to vector<16x128xf32>
    %624 = arith.addf %623, %622 : vector<16x128xf32>
    %625 = math.log %624 : vector<16x128xf32>
    %626 = arith.addf %618, %625 : vector<16x128xf32>
    %627 = arith.mulf %24, %563 : vector<16x128xf32>
    %628 = math.exp %627 : vector<16x128xf32>
    %629 = arith.addf %626, %628 : vector<16x128xf32>
    %cst_174 = arith.constant 9.99999997E-7 : f32
    %630 = vector.broadcast %cst_174 : f32 to vector<16x128xf32>
    %631 = arith.addf %629, %630 : vector<16x128xf32>
    %632 = tpu.reciprocal %631 {approx = true} : vector<16x128xf32> -> vector<16x128xf32>
    %633 = arith.mulf %45, %632 : vector<16x128xf32>
    %634 = arith.addf %612, %633 : vector<16x128xf32>
    %c127_i32_175 = arith.constant 127 : i32
    %635 = tpu.dynamic_rotate %561 by %c127_i32_175 dim 1 : vector<16x128xf32>, i32 -> vector<16x128xf32>
    %c127_i32_176 = arith.constant 127 : i32
    %636 = tpu.dynamic_rotate %562 by %c127_i32_176 dim 1 : vector<16x128xf32>, i32 -> vector<16x128xf32>
    %c127_i32_177 = arith.constant 127 : i32
    %637 = tpu.dynamic_rotate %563 by %c127_i32_177 dim 1 : vector<16x128xf32>, i32 -> vector<16x128xf32>
    %638 = arith.mulf %1, %635 : vector<16x128xf32>
    %639 = arith.mulf %3, %636 : vector<16x128xf32>
    %cst_178 = arith.constant 0.000000e+00 : f32
    %640 = vector.broadcast %cst_178 : f32 to vector<16x128xf32>
    %641 = arith.maximumf %638, %640 : vector<16x128xf32>
    %642 = arith.mulf %638, %639 : vector<16x128xf32>
    %643 = arith.subf %641, %642 : vector<16x128xf32>
    %644 = math.absf %638 : vector<16x128xf32>
    %cst_179 = arith.constant 0.000000e+00 : f32
    %645 = vector.broadcast %cst_179 : f32 to vector<16x128xf32>
    %646 = arith.subf %645, %644 : vector<16x128xf32>
    %647 = math.exp %646 : vector<16x128xf32>
    %cst_180 = arith.constant 1.000000e+00 : f32
    %648 = vector.broadcast %cst_180 : f32 to vector<16x128xf32>
    %649 = arith.addf %648, %647 : vector<16x128xf32>
    %650 = math.log %649 : vector<16x128xf32>
    %651 = arith.addf %643, %650 : vector<16x128xf32>
    %652 = arith.mulf %24, %637 : vector<16x128xf32>
    %653 = math.exp %652 : vector<16x128xf32>
    %654 = arith.addf %651, %653 : vector<16x128xf32>
    %cst_181 = arith.constant 9.99999997E-7 : f32
    %655 = vector.broadcast %cst_181 : f32 to vector<16x128xf32>
    %656 = arith.addf %654, %655 : vector<16x128xf32>
    %657 = tpu.reciprocal %656 {approx = true} : vector<16x128xf32> -> vector<16x128xf32>
    %658 = arith.mulf %51, %657 : vector<16x128xf32>
    %659 = arith.addf %634, %658 : vector<16x128xf32>
    %c126_i32_182 = arith.constant 126 : i32
    %660 = tpu.dynamic_rotate %561 by %c126_i32_182 dim 1 : vector<16x128xf32>, i32 -> vector<16x128xf32>
    %c126_i32_183 = arith.constant 126 : i32
    %661 = tpu.dynamic_rotate %562 by %c126_i32_183 dim 1 : vector<16x128xf32>, i32 -> vector<16x128xf32>
    %c126_i32_184 = arith.constant 126 : i32
    %662 = tpu.dynamic_rotate %563 by %c126_i32_184 dim 1 : vector<16x128xf32>, i32 -> vector<16x128xf32>
    %663 = arith.mulf %1, %660 : vector<16x128xf32>
    %664 = arith.mulf %3, %661 : vector<16x128xf32>
    %cst_185 = arith.constant 0.000000e+00 : f32
    %665 = vector.broadcast %cst_185 : f32 to vector<16x128xf32>
    %666 = arith.maximumf %663, %665 : vector<16x128xf32>
    %667 = arith.mulf %663, %664 : vector<16x128xf32>
    %668 = arith.subf %666, %667 : vector<16x128xf32>
    %669 = math.absf %663 : vector<16x128xf32>
    %cst_186 = arith.constant 0.000000e+00 : f32
    %670 = vector.broadcast %cst_186 : f32 to vector<16x128xf32>
    %671 = arith.subf %670, %669 : vector<16x128xf32>
    %672 = math.exp %671 : vector<16x128xf32>
    %cst_187 = arith.constant 1.000000e+00 : f32
    %673 = vector.broadcast %cst_187 : f32 to vector<16x128xf32>
    %674 = arith.addf %673, %672 : vector<16x128xf32>
    %675 = math.log %674 : vector<16x128xf32>
    %676 = arith.addf %668, %675 : vector<16x128xf32>
    %677 = arith.mulf %24, %662 : vector<16x128xf32>
    %678 = math.exp %677 : vector<16x128xf32>
    %679 = arith.addf %676, %678 : vector<16x128xf32>
    %cst_188 = arith.constant 9.99999997E-7 : f32
    %680 = vector.broadcast %cst_188 : f32 to vector<16x128xf32>
    %681 = arith.addf %679, %680 : vector<16x128xf32>
    %682 = tpu.reciprocal %681 {approx = true} : vector<16x128xf32> -> vector<16x128xf32>
    %683 = arith.mulf %54, %682 : vector<16x128xf32>
    %684 = arith.addf %659, %683 : vector<16x128xf32>
    %685 = vector.broadcast %30 : vector<16x1xf32> to vector<16x128xf32>
    %686 = arith.mulf %685, %684 : vector<16x128xf32>
    %687 = arith.addf %560, %686 : vector<16x128xf32>
    %cst_189 = arith.constant dense<0.000000e+00> : vector<128xf32>
    %688 = vector.multi_reduction <add>, %687, %cst_189 [0] : vector<16x128xf32> to vector<128xf32>
    %689 = vector.shape_cast %688 : vector<128xf32> to vector<1x128xf32>
    %cst_190 = arith.constant dense<0.000000e+00> : vector<1xf32>
    %690 = vector.multi_reduction <add>, %689, %cst_190 [1] : vector<1x128xf32> to vector<1xf32>
    %691 = vector.shape_cast %690 : vector<1xf32> to vector<1x1xf32>
    %c0_191 = arith.constant 0 : index
    %c0_192 = arith.constant 0 : index
    %c0_193 = arith.constant 0 : index
    %692 = vector.load %arg5[%c0_191, %c0_192, %c0_193] : memref<1x1x1xf32, #tpu.memory_space<vmem>>, vector<1x1x1xf32>
    %693 = vector.shape_cast %692 : vector<1x1x1xf32> to vector<1x1xf32>
    %694 = vector.shape_cast %691 : vector<1x1xf32> to vector<1x1x1xf32>
    tpu.vector_store %arg5[%c0_191, %c0_192, %c0_193], %694 {strides = array<i32>} : memref<1x1x1xf32, #tpu.memory_space<vmem>>, vector<1x1x1xf32>,
    return
  }
  func.func @transform_0(%arg0: i32) -> (i32, i32, i32) {
    %c0_i32 = arith.constant 0 : i32
    %c0_i32_0 = arith.constant 0 : i32
    %c0_i32_1 = arith.constant 0 : i32
    return %arg0, %c0_i32, %c0_i32_0 : i32, i32, i32
  }
  func.func @transform_1(%arg0: i32) -> (i32, i32, i32) {
    %c0_i32 = arith.constant 0 : i32
    %c0_i32_0 = arith.constant 0 : i32
    %c0_i32_1 = arith.constant 0 : i32
    return %arg0, %c0_i32, %c0_i32_0 : i32, i32, i32
  }
  func.func @transform_2(%arg0: i32) -> (i32, i32) {
    %c0_i32 = arith.constant 0 : i32
    %c0_i32_0 = arith.constant 0 : i32
    %c0_i32_1 = arith.constant 0 : i32
    return %c0_i32, %c0_i32_0 : i32, i32
  }
  func.func @transform_3(%arg0: i32) -> (i32, i32) {
    %c0_i32 = arith.constant 0 : i32
    %c0_i32_0 = arith.constant 0 : i32
    %c0_i32_1 = arith.constant 0 : i32
    return %c0_i32, %c0_i32_0 : i32, i32
  }
  func.func @transform_4(%arg0: i32) -> (i32, i32, i32) {
    %c0_i32 = arith.constant 0 : i32
    %c0_i32_0 = arith.constant 0 : i32
    %c0_i32_1 = arith.constant 0 : i32
    return %arg0, %c0_i32, %c0_i32_0 : i32, i32, i32
  }
}

</mosaic_0001>

<llo_original>
// kernel: tpu_custom_call.1
$region0: #{tpu_custom_call.1}
  #allocation0 [shape = 'u32[]', space=smem, size = 0x4, offset = 0x4, fixed_abs, tag = 'smem constant byte address 0x4 - core index']
  #allocation1 [shape = 'u32[144,128]{1,0:T(1,128)}', space=vmem, size = 0x12000, scoped, tag = 'internal scratch']
  %s0 = inlined_call_operand.vmem [shape: f32[1,16,128], index: 0, kind: input, shape index: {}]
  %s1 = inlined_call_operand.hbm [shape: f32[1,16,128], index: 1, kind: input, shape index: {}]
  %s2 = inlined_call_operand.vmem [shape: f32[16,5], index: 2, kind: input, shape index: {}]
  %s3 = inlined_call_operand.vmem [shape: f32[8,128], index: 3, kind: input, shape index: {}]
  %s4 = inlined_call_operand.hbm [shape: f32[1,1,1], index: 4, kind: output, shape index: {}]
  %s5 = sld [smem:[#allocation0]]
  $region30: #{tpu_custom_call.1} parent=0
    _
  %s7 = ssub.s32 1, %s5
  %s8 = scalar_select 0, %s7, %s5
  $region1: #{tpu_custom_call.1} parent=0
    #allocation2 [shape = 'u8[8192]{0}', space=vmem, size = 0x2000, scoped, tag = 'input window, operand 1, single buffered']
    #allocation3 [shape = 's32[1]{0}', space=sflag, size = 0x4, scoped, tag = 'scoped memory for tpu_custom_call.1']
    #allocation4 [shape = 's32[1]{0}', space=sflag, size = 0x4, scoped, tag = 'scoped memory for tpu_custom_call.1']
    #allocation5 [shape = 'u8[512]{0}', space=vmem, size = 0x400, scoped, tag = 'output window, operand 0, single buffered']
    %9 = vsyncpa [#allocation3], 0
    %10 = vsyncpa [#allocation4], 0
    // Predicated region
    $region2: #{tpu_custom_call.1} parent=1 // pred_check
      _
    $region3: #{tpu_custom_call.1} parent=1 // pred_check_branch
      %12 = sbr.rel (0) target = $region5
    $region4: #{tpu_custom_call.1} parent=1 // pred_region
      _
    $region5: #{tpu_custom_call.1} parent=1 // pred_fallthru
      _
    // Predicated region
    $region6: #{tpu_custom_call.1} parent=1 // pred_check
      _
    $region7: #{tpu_custom_call.1} parent=1 // pred_check_branch
      %14 = sbr.rel (0) target = $region9
    $region8: #{tpu_custom_call.1} parent=1 // pred_region
      %s16 = ssub.s32 256, 256
      %17 = vsyncadd [#allocation3], %s16
      %s18 = sshll.u32 [#allocation2], 4
      %s19 = int_to_ptr.vmem [resolvable:$true] %s18
      %24 = dma.hbm_to_vmem [thread:$0]  %s1, 256, %s19, [#allocation3], 128, 128, 8
    $region9: #{tpu_custom_call.1} parent=1 // pred_fallthru
      _
    // Predicated region
    $region10: #{tpu_custom_call.1} parent=1 // pred_check
      _
    $region11: #{tpu_custom_call.1} parent=1 // pred_check_branch
      %26 = sbr.rel (0) target = $region13
    $region12: #{tpu_custom_call.1} parent=1 // pred_region
      _
    $region13: #{tpu_custom_call.1} parent=1 // pred_fallthru
      _
    // Predicated region
    $region14: #{tpu_custom_call.1} parent=1 // pred_check
      _
    $region15: #{tpu_custom_call.1} parent=1 // pred_check_branch
      %28 = sbr.rel (0) target = $region17
    $region16: #{tpu_custom_call.1} parent=1 // pred_region
      _
    $region17: #{tpu_custom_call.1} parent=1 // pred_fallthru
      _
    // Predicated region
    $region18: #{tpu_custom_call.1} parent=1 // pred_check
      _
    $region19: #{tpu_custom_call.1} parent=1 // pred_check_branch
      %30 = sbr.rel (0) target = $region21
    $region20: #{tpu_custom_call.1} parent=1 // pred_region
      %31 = dma.done [#allocation3], 256
    $region21: #{tpu_custom_call.1} parent=1 // pred_fallthru
      _
    %v32 = vld [vmem:[%s0] sm:$0xff]
    %v33 = vld [vmem:[%s0 + $0x8] sm:$0xff]
    %v34 = vld [vmem:[#allocation2] sm:$0xff]
    %v35 = vld [vmem:[#allocation2 + $0x8] sm:$0xff]
    %v36 = vmax.f32 %v32, 0.0
    %v37 = vmax.f32 %v33, 0.0
    %v38 = vmul.f32 %v32, %v34
    %v39 = vmul.f32 %v33, %v35
    %v40 = vsub.f32 %v36, %v38
    %v41 = vsub.f32 %v37, %v39
    %v42 = vand.u32 2147483647, %v32
    %v43 = vand.u32 2147483647, %v33
    %v44 = vsub.f32 0.0, %v42
    %v45 = vsub.f32 0.0, %v43
    %v46 = vmul.f32 %v44, 1.442695
    %v47 = vpow.pop %v46
    %v48 = vmul.f32 %v45, 1.442695
    %v49 = vpow.pop %v48
    %v50 = vadd.f32 %v47, 1.0
    %v51 = vadd.f32 %v49, 1.0
    %v52 = vlog2.pop %v50
    %v53 = vmul.f32 %v52, 0.6931472
    %v54 = vlog2.pop %v51
    %v55 = vmul.f32 %v54, 0.6931472
    %v56 = vadd.f32 %v40, %v53
    %v57 = vadd.f32 %v41, %v55
    %v58 = vsub.f32 0.0, %v32
    %v59 = vsub.f32 0.0, %v33
    %v60 = vmul.f32 %v58, 1.442695
    %v61 = vpow.pop %v60
    %v62 = vmul.f32 %v59, 1.442695
    %v63 = vpow.pop %v62
    %v64 = vadd.f32 %v61, 1.0
    %v65 = vadd.f32 %v63, 1.0
    %v66 = vrcp.pop %v64
    %v67 = vmul.f32 1.0, %v66
    %v68 = vrcp.pop %v65
    %v69 = vmul.f32 1.0, %v68
    %v70 = vsub.f32 0.0, %v67
    %v71 = vsub.f32 0.0, %v69
    %v72 = vld [vmem:[%s2] sm:$0xff]
    %v73 = vld [vmem:[%s2 + $0x8] sm:$0xff]
    %v74 = vld [vmem:[%s3] sm:$0x1]
    %v75 = vlaneseq
    %v76 = vshrl.u32 %v75, 7
    %v77 = vsub.s32 0, %v76
    %v78 = vrot.slane %v74, %v77
    %v79 = vmul.f32 %v56, %v78
    %v80 = vmul.f32 %v57, %v78
    %v81 = vld [vmem:[%s3 + $0x1] sm:$0x1]
    %v82 = vlaneseq
    %v83 = vshrl.u32 %v82, 7
    %v84 = vsub.s32 0, %v83
    %v85 = vrot.slane %v81, %v84
    %v86 = vmul.f32 %v56, %v85
    %v87 = vmul.f32 %v57, %v85
    %v88 = vld [vmem:[%s3 + $0x2] sm:$0x1]
    %v89 = vlaneseq
    %v90 = vshrl.u32 %v89, 7
    %v91 = vsub.s32 0, %v90
    %v92 = vrot.slane %v88, %v91
    %v93 = vmul.f32 %v56, %v92
    %v94 = vmul.f32 %v57, %v92
    %v95 = vld [vmem:[%s3 + $0x3] sm:$0x1]
    %v96 = vlaneseq
    %v97 = vshrl.u32 %v96, 7
    %v98 = vsub.s32 0, %v97
    %v99 = vrot.slane %v95, %v98
    %v100 = vmul.f32 %v56, %v99
    %v101 = vmul.f32 %v57, %v99
    %v102 = vld [vmem:[%s3 + $0x4] sm:$0x1]
    %v103 = vlaneseq
    %v104 = vshrl.u32 %v103, 7
    %v105 = vsub.s32 0, %v104
    %v106 = vrot.slane %v102, %v105
    %v107 = vmul.f32 %v56, %v106
    %v108 = vmul.f32 %v57, %v106
    %v109 = vld [vmem:[%s3 + $0x5] sm:$0x1]
    %v110 = vlaneseq
    %v111 = vshrl.u32 %v110, 7
    %v112 = vsub.s32 0, %v111
    %v113 = vrot.slane %v109, %v112
    %v114 = vmul.f32 %v56, %v113
    %v115 = vmul.f32 %v57, %v113
    %v116 = vld [vmem:[%s3 + $0x6] sm:$0x1]
    %v117 = vlaneseq
    %v118 = vshrl.u32 %v117, 7
    %v119 = vsub.s32 0, %v118
    %v120 = vrot.slane %v116, %v119
    %v121 = vmul.f32 %v56, %v120
    %v122 = vmul.f32 %v57, %v120
    %v123 = vld [vmem:[%s3 + $0x7] sm:$0x1]
    %v124 = vlaneseq
    %v125 = vshrl.u32 %v124, 7
    %v126 = vsub.s32 0, %v125
    %v127 = vrot.slane %v123, %v126
    %v128 = vmul.f32 %v56, %v127
    %v129 = vmul.f32 %v57, %v127
    %v130 = vrot.slane %v32, 6
    %v131 = vrot.slane %v33, 6
    %v132 = vlaneseq
    %v133 = vshrl.u32 %v132, 7
    %vm134 = vcmp.lt.s32.totalorder %v133, 2
    %v135 = vsel %vm134, %v130, %v131
    %v136 = vsel %vm134, %v131, %v130
    %v137 = vrot.slane %v34, 6
    %v138 = vrot.slane %v35, 6
    %v139 = vsel %vm134, %v137, %v138
    %v140 = vsel %vm134, %v138, %v137
    %v141 = vrot.slane %v67, 6
    %v142 = vrot.slane %v69, 6
    %v143 = vsel %vm134, %v141, %v142
    %v144 = vsel %vm134, %v142, %v141
    %145 = vrot.lane.b32.xlu0 %v136, 2
    %v146 = vpop.permute.xlu0 %145
    %147 = vrot.lane.b32.xlu0 %v135, 2
    %v148 = vpop.permute.xlu0 %147
    %149 = vrot.lane.b32.xlu0 %v140, 2
    %v150 = vpop.permute.xlu0 %149
    %151 = vrot.lane.b32.xlu0 %v139, 2
    %v152 = vpop.permute.xlu0 %151
    %153 = vrot.lane.b32.xlu0 %v144, 2
    %v154 = vpop.permute.xlu0 %153
    %155 = vrot.lane.b32.xlu0 %v143, 2
    %v156 = vpop.permute.xlu0 %155
    %v157 = vmul.f32 %v32, %v146
    %v158 = vmul.f32 %v33, %v148
    %v159 = vmul.f32 %v34, %v150
    %v160 = vmul.f32 %v35, %v152
    %v161 = vmax.f32 %v157, 0.0
    %v162 = vmax.f32 %v158, 0.0
    %v163 = vmul.f32 %v157, %v159
    %v164 = vmul.f32 %v158, %v160
    %v165 = vsub.f32 %v161, %v163
    %v166 = vsub.f32 %v162, %v164
    %v167 = vand.u32 2147483647, %v157
    %v168 = vand.u32 2147483647, %v158
    %v169 = vsub.f32 0.0, %v167
    %v170 = vsub.f32 0.0, %v168
    %v171 = vmul.f32 %v169, 1.442695
    %v172 = vpow.pop %v171
    %v173 = vmul.f32 %v170, 1.442695
    %v174 = vpow.pop %v173
    %v175 = vadd.f32 %v172, 1.0
    %v176 = vadd.f32 %v174, 1.0
    %v177 = vlog2.pop %v175
    %v178 = vmul.f32 %v177, 0.6931472
    %v179 = vlog2.pop %v176
    %v180 = vmul.f32 %v179, 0.6931472
    %v181 = vadd.f32 %v165, %v178
    %v182 = vadd.f32 %v166, %v180
    %v183 = vmul.f32 %v70, %v154
    %v184 = vmul.f32 %v71, %v156
    %v185 = vmul.f32 %v183, 1.442695
    %v186 = vpow.pop %v185
    %v187 = vmul.f32 %v184, 1.442695
    %v188 = vpow.pop %v187
    %v189 = vadd.f32 %v181, %v186
    %v190 = vadd.f32 %v182, %v188
    %v191 = vadd.f32 %v189, 1e-06
    %v192 = vadd.f32 %v190, 1e-06
    %v193 = vrcp.pop %v191
    %v194 = vrcp.pop %v192
    %v195 = vmul.f32 %v79, %v193
    %v196 = vmul.f32 %v80, %v194
    %197 = vrot.lane.b32.xlu0 %v136, 1
    %v198 = vpop.permute.xlu0 %197
    %199 = vrot.lane.b32.xlu0 %v135, 1
    %v200 = vpop.permute.xlu0 %199
    %201 = vrot.lane.b32.xlu0 %v140, 1
    %v202 = vpop.permute.xlu0 %201
    %203 = vrot.lane.b32.xlu0 %v139, 1
    %v204 = vpop.permute.xlu0 %203
    %205 = vrot.lane.b32.xlu0 %v144, 1
    %v206 = vpop.permute.xlu0 %205
    %207 = vrot.lane.b32.xlu0 %v143, 1
    %v208 = vpop.permute.xlu0 %207
    %v209 = vmul.f32 %v32, %v198
    %v210 = vmul.f32 %v33, %v200
    %v211 = vmul.f32 %v34, %v202
    %v212 = vmul.f32 %v35, %v204
    %v213 = vmax.f32 %v209, 0.0
    %v214 = vmax.f32 %v210, 0.0
    %v215 = vmul.f32 %v209, %v211
    %v216 = vmul.f32 %v210, %v212
    %v217 = vsub.f32 %v213, %v215
    %v218 = vsub.f32 %v214, %v216
    %v219 = vand.u32 2147483647, %v209
    %v220 = vand.u32 2147483647, %v210
    %v221 = vsub.f32 0.0, %v219
    %v222 = vsub.f32 0.0, %v220
    %v223 = vmul.f32 %v221, 1.442695
    %v224 = vpow.pop %v223
    %v225 = vmul.f32 %v222, 1.442695
    %v226 = vpow.pop %v225
    %v227 = vadd.f32 %v224, 1.0
    %v228 = vadd.f32 %v226, 1.0
    %v229 = vlog2.pop %v227
    %v230 = vmul.f32 %v229, 0.6931472
    %v231 = vlog2.pop %v228
    %v232 = vmul.f32 %v231, 0.6931472
    %v233 = vadd.f32 %v217, %v230
    %v234 = vadd.f32 %v218, %v232
    %v235 = vmul.f32 %v70, %v206
    %v236 = vmul.f32 %v71, %v208
    %v237 = vmul.f32 %v235, 1.442695
    %v238 = vpow.pop %v237
    %v239 = vmul.f32 %v236, 1.442695
    %v240 = vpow.pop %v239
    %v241 = vadd.f32 %v233, %v238
    %v242 = vadd.f32 %v234, %v240
    %v243 = vadd.f32 %v241, 1e-06
    %v244 = vadd.f32 %v242, 1e-06
    %v245 = vrcp.pop %v243
    %v246 = vrcp.pop %v244
    %v247 = vmul.f32 %v93, %v245
    %v248 = vmul.f32 %v94, %v246
    %v249 = vadd.f32 %v195, %v247
    %v250 = vadd.f32 %v196, %v248
    %v251 = vmul.f32 %v32, %v136
    %v252 = vmul.f32 %v33, %v135
    %v253 = vmul.f32 %v34, %v140
    %v254 = vmul.f32 %v35, %v139
    %v255 = vmax.f32 %v251, 0.0
    %v256 = vmax.f32 %v252, 0.0
    %v257 = vmul.f32 %v251, %v253
    %v258 = vmul.f32 %v252, %v254
    %v259 = vsub.f32 %v255, %v257
    %v260 = vsub.f32 %v256, %v258
    %v261 = vand.u32 2147483647, %v251
    %v262 = vand.u32 2147483647, %v252
    %v263 = vsub.f32 0.0, %v261
    %v264 = vsub.f32 0.0, %v262
    %v265 = vmul.f32 %v263, 1.442695
    %v266 = vpow.pop %v265
    %v267 = vmul.f32 %v264, 1.442695
    %v268 = vpow.pop %v267
    %v269 = vadd.f32 %v266, 1.0
    %v270 = vadd.f32 %v268, 1.0
    %v271 = vlog2.pop %v269
    %v272 = vmul.f32 %v271, 0.6931472
    %v273 = vlog2.pop %v270
    %v274 = vmul.f32 %v273, 0.6931472
    %v275 = vadd.f32 %v259, %v272
    %v276 = vadd.f32 %v260, %v274
    %v277 = vmul.f32 %v70, %v144
    %v278 = vmul.f32 %v71, %v143
    %v279 = vmul.f32 %v277, 1.442695
    %v280 = vpow.pop %v279
    %v281 = vmul.f32 %v278, 1.442695
    %v282 = vpow.pop %v281
    %v283 = vadd.f32 %v275, %v280
    %v284 = vadd.f32 %v276, %v282
    %v285 = vadd.f32 %v283, 1e-06
    %v286 = vadd.f32 %v284, 1e-06
    %v287 = vrcp.pop %v285
    %v288 = vrcp.pop %v286
    %v289 = vmul.f32 %v107, %v287
    %v290 = vmul.f32 %v108, %v288
    %v291 = vadd.f32 %v249, %v289
    %v292 = vadd.f32 %v250, %v290
    %293 = vrot.lane.b32.xlu0 %v136, 127
    %v294 = vpop.permute.xlu0 %293
    %295 = vrot.lane.b32.xlu0 %v135, 127
    %v296 = vpop.permute.xlu0 %295
    %297 = vrot.lane.b32.xlu0 %v140, 127
    %v298 = vpop.permute.xlu0 %297
    %299 = vrot.lane.b32.xlu0 %v139, 127
    %v300 = vpop.permute.xlu0 %299
    %301 = vrot.lane.b32.xlu0 %v144, 127
    %v302 = vpop.permute.xlu0 %301
    %303 = vrot.lane.b32.xlu0 %v143, 127
    %v304 = vpop.permute.xlu0 %303
    %v305 = vmul.f32 %v32, %v294
    %v306 = vmul.f32 %v33, %v296
    %v307 = vmul.f32 %v34, %v298
    %v308 = vmul.f32 %v35, %v300
    %v309 = vmax.f32 %v305, 0.0
    %v310 = vmax.f32 %v306, 0.0
    %v311 = vmul.f32 %v305, %v307
    %v312 = vmul.f32 %v306, %v308
    %v313 = vsub.f32 %v309, %v311
    %v314 = vsub.f32 %v310, %v312
    %v315 = vand.u32 2147483647, %v305
    %v316 = vand.u32 2147483647, %v306
    %v317 = vsub.f32 0.0, %v315
    %v318 = vsub.f32 0.0, %v316
    %v319 = vmul.f32 %v317, 1.442695
    %v320 = vpow.pop %v319
    %v321 = vmul.f32 %v318, 1.442695
    %v322 = vpow.pop %v321
    %v323 = vadd.f32 %v320, 1.0
    %v324 = vadd.f32 %v322, 1.0
    %v325 = vlog2.pop %v323
    %v326 = vmul.f32 %v325, 0.6931472
    %v327 = vlog2.pop %v324
    %v328 = vmul.f32 %v327, 0.6931472
    %v329 = vadd.f32 %v313, %v326
    %v330 = vadd.f32 %v314, %v328
    %v331 = vmul.f32 %v70, %v302
    %v332 = vmul.f32 %v71, %v304
    %v333 = vmul.f32 %v331, 1.442695
    %v334 = vpow.pop %v333
    %v335 = vmul.f32 %v332, 1.442695
    %v336 = vpow.pop %v335
    %v337 = vadd.f32 %v329, %v334
    %v338 = vadd.f32 %v330, %v336
    %v339 = vadd.f32 %v337, 1e-06
    %v340 = vadd.f32 %v338, 1e-06
    %v341 = vrcp.pop %v339
    %v342 = vrcp.pop %v340
    %v343 = vmul.f32 %v121, %v341
    %v344 = vmul.f32 %v122, %v342
    %v345 = vadd.f32 %v291, %v343
    %v346 = vadd.f32 %v292, %v344
    %347 = vrot.lane.b32.xlu0 %v136, 126
    %v348 = vpop.permute.xlu0 %347
    %349 = vrot.lane.b32.xlu0 %v135, 126
    %v350 = vpop.permute.xlu0 %349
    %351 = vrot.lane.b32.xlu0 %v140, 126
    %v352 = vpop.permute.xlu0 %351
    %353 = vrot.lane.b32.xlu0 %v139, 126
    %v354 = vpop.permute.xlu0 %353
    %355 = vrot.lane.b32.xlu0 %v144, 126
    %v356 = vpop.permute.xlu0 %355
    %357 = vrot.lane.b32.xlu0 %v143, 126
    %v358 = vpop.permute.xlu0 %357
    %v359 = vmul.f32 %v32, %v348
    %v360 = vmul.f32 %v33, %v350
    %v361 = vmul.f32 %v34, %v352
    %v362 = vmul.f32 %v35, %v354
    %v363 = vmax.f32 %v359, 0.0
    %v364 = vmax.f32 %v360, 0.0
    %v365 = vmul.f32 %v359, %v361
    %v366 = vmul.f32 %v360, %v362
    %v367 = vsub.f32 %v363, %v365
    %v368 = vsub.f32 %v364, %v366
    %v369 = vand.u32 2147483647, %v359
    %v370 = vand.u32 2147483647, %v360
    %v371 = vsub.f32 0.0, %v369
    %v372 = vsub.f32 0.0, %v370
    %v373 = vmul.f32 %v371, 1.442695
    %v374 = vpow.pop %v373
    %v375 = vmul.f32 %v372, 1.442695
    %v376 = vpow.pop %v375
    %v377 = vadd.f32 %v374, 1.0
    %v378 = vadd.f32 %v376, 1.0
    %v379 = vlog2.pop %v377
    %v380 = vmul.f32 %v379, 0.6931472
    %v381 = vlog2.pop %v378
    %v382 = vmul.f32 %v381, 0.6931472
    %v383 = vadd.f32 %v367, %v380
    %v384 = vadd.f32 %v368, %v382
    %v385 = vmul.f32 %v70, %v356
    %v386 = vmul.f32 %v71, %v358
    %v387 = vmul.f32 %v385, 1.442695
    %v388 = vpow.pop %v387
    %v389 = vmul.f32 %v386, 1.442695
    %v390 = vpow.pop %v389
    %v391 = vadd.f32 %v383, %v388
    %v392 = vadd.f32 %v384, %v390
    %v393 = vadd.f32 %v391, 1e-06
    %v394 = vadd.f32 %v392, 1e-06
    %v395 = vrcp.pop %v393
    %v396 = vrcp.pop %v394
    %v397 = vmul.f32 %v128, %v395
    %v398 = vmul.f32 %v129, %v396
    %v399 = vadd.f32 %v345, %v397
    %v400 = vadd.f32 %v346, %v398
    %402 = vset.pattern.permute.xlu0 0
    %403 = vperm.xlu0 %402, %v72
    %v404 = vpop.permute.xlu0 %403
    %407 = vset.pattern.permute.xlu0 0
    %408 = vperm.xlu0 %407, %v73
    %v409 = vpop.permute.xlu0 %408
    %v411 = vmul.f32 %v404, %v399
    %v412 = vmul.f32 %v409, %v400
    %v413 = vadd.f32 %v411, 0.0
    %v414 = vadd.f32 %v412, 0.0
    %v415 = vrot.slane %v32, 7
    %v416 = vrot.slane %v33, 7
    %vm417 = vcmp.lt.s32.totalorder %v133, 1
    %v418 = vsel %vm417, %v415, %v416
    %v419 = vsel %vm417, %v416, %v415
    %v420 = vrot.slane %v34, 7
    %v421 = vrot.slane %v35, 7
    %v422 = vsel %vm417, %v420, %v421
    %v423 = vsel %vm417, %v421, %v420
    %v424 = vrot.slane %v67, 7
    %v425 = vrot.slane %v69, 7
    %v426 = vsel %vm417, %v424, %v425
    %v427 = vsel %vm417, %v425, %v424
    %428 = vrot.lane.b32.xlu0 %v419, 2
    %v429 = vpop.permute.xlu0 %428
    %430 = vrot.lane.b32.xlu0 %v418, 2
    %v431 = vpop.permute.xlu0 %430
    %432 = vrot.lane.b32.xlu0 %v423, 2
    %v433 = vpop.permute.xlu0 %432
    %434 = vrot.lane.b32.xlu0 %v422, 2
    %v435 = vpop.permute.xlu0 %434
    %436 = vrot.lane.b32.xlu0 %v427, 2
    %v437 = vpop.permute.xlu0 %436
    %438 = vrot.lane.b32.xlu0 %v426, 2
    %v439 = vpop.permute.xlu0 %438
    %v440 = vmul.f32 %v32, %v429
    %v441 = vmul.f32 %v33, %v431
    %v442 = vmul.f32 %v34, %v433
    %v443 = vmul.f32 %v35, %v435
    %v444 = vmax.f32 %v440, 0.0
    %v445 = vmax.f32 %v441, 0.0
    %v446 = vmul.f32 %v440, %v442
    %v447 = vmul.f32 %v441, %v443
    %v448 = vsub.f32 %v444, %v446
    %v449 = vsub.f32 %v445, %v447
    %v450 = vand.u32 2147483647, %v440
    %v451 = vand.u32 2147483647, %v441
    %v452 = vsub.f32 0.0, %v450
    %v453 = vsub.f32 0.0, %v451
    %v454 = vmul.f32 %v452, 1.442695
    %v455 = vpow.pop %v454
    %v456 = vmul.f32 %v453, 1.442695
    %v457 = vpow.pop %v456
    %v458 = vadd.f32 %v455, 1.0
    %v459 = vadd.f32 %v457, 1.0
    %v460 = vlog2.pop %v458
    %v461 = vmul.f32 %v460, 0.6931472
    %v462 = vlog2.pop %v459
    %v463 = vmul.f32 %v462, 0.6931472
    %v464 = vadd.f32 %v448, %v461
    %v465 = vadd.f32 %v449, %v463
    %v466 = vmul.f32 %v70, %v437
    %v467 = vmul.f32 %v71, %v439
    %v468 = vmul.f32 %v466, 1.442695
    %v469 = vpow.pop %v468
    %v470 = vmul.f32 %v467, 1.442695
    %v471 = vpow.pop %v470
    %v472 = vadd.f32 %v464, %v469
    %v473 = vadd.f32 %v465, %v471
    %v474 = vadd.f32 %v472, 1e-06
    %v475 = vadd.f32 %v473, 1e-06
    %v476 = vrcp.pop %v474
    %v477 = vrcp.pop %v475
    %v478 = vmul.f32 %v79, %v476
    %v479 = vmul.f32 %v80, %v477
    %480 = vrot.lane.b32.xlu0 %v419, 1
    %v481 = vpop.permute.xlu0 %480
    %482 = vrot.lane.b32.xlu0 %v418, 1
    %v483 = vpop.permute.xlu0 %482
    %484 = vrot.lane.b32.xlu0 %v423, 1
    %v485 = vpop.permute.xlu0 %484
    %486 = vrot.lane.b32.xlu0 %v422, 1
    %v487 = vpop.permute.xlu0 %486
    %488 = vrot.lane.b32.xlu0 %v427, 1
    %v489 = vpop.permute.xlu0 %488
    %490 = vrot.lane.b32.xlu0 %v426, 1
    %v491 = vpop.permute.xlu0 %490
    %v492 = vmul.f32 %v32, %v481
    %v493 = vmul.f32 %v33, %v483
    %v494 = vmul.f32 %v34, %v485
    %v495 = vmul.f32 %v35, %v487
    %v496 = vmax.f32 %v492, 0.0
    %v497 = vmax.f32 %v493, 0.0
    %v498 = vmul.f32 %v492, %v494
    %v499 = vmul.f32 %v493, %v495
    %v500 = vsub.f32 %v496, %v498
    %v501 = vsub.f32 %v497, %v499
    %v502 = vand.u32 2147483647, %v492
    %v503 = vand.u32 2147483647, %v493
    %v504 = vsub.f32 0.0, %v502
    %v505 = vsub.f32 0.0, %v503
    %v506 = vmul.f32 %v504, 1.442695
    %v507 = vpow.pop %v506
    %v508 = vmul.f32 %v505, 1.442695
    %v509 = vpow.pop %v508
    %v510 = vadd.f32 %v507, 1.0
    %v511 = vadd.f32 %v509, 1.0
    %v512 = vlog2.pop %v510
    %v513 = vmul.f32 %v512, 0.6931472
    %v514 = vlog2.pop %v511
    %v515 = vmul.f32 %v514, 0.6931472
    %v516 = vadd.f32 %v500, %v513
    %v517 = vadd.f32 %v501, %v515
    %v518 = vmul.f32 %v70, %v489
    %v519 = vmul.f32 %v71, %v491
    %v520 = vmul.f32 %v518, 1.442695
    %v521 = vpow.pop %v520
    %v522 = vmul.f32 %v519, 1.442695
    %v523 = vpow.pop %v522
    %v524 = vadd.f32 %v516, %v521
    %v525 = vadd.f32 %v517, %v523
    %v526 = vadd.f32 %v524, 1e-06
    %v527 = vadd.f32 %v525, 1e-06
    %v528 = vrcp.pop %v526
    %v529 = vrcp.pop %v527
    %v530 = vmul.f32 %v86, %v528
    %v531 = vmul.f32 %v87, %v529
    %v532 = vadd.f32 %v478, %v530
    %v533 = vadd.f32 %v479, %v531
    %v534 = vmul.f32 %v32, %v419
    %v535 = vmul.f32 %v33, %v418
    %v536 = vmul.f32 %v34, %v423
    %v537 = vmul.f32 %v35, %v422
    %v538 = vmax.f32 %v534, 0.0
    %v539 = vmax.f32 %v535, 0.0
    %v540 = vmul.f32 %v534, %v536
    %v541 = vmul.f32 %v535, %v537
    %v542 = vsub.f32 %v538, %v540
    %v543 = vsub.f32 %v539, %v541
    %v544 = vand.u32 2147483647, %v534
    %v545 = vand.u32 2147483647, %v535
    %v546 = vsub.f32 0.0, %v544
    %v547 = vsub.f32 0.0, %v545
    %v548 = vmul.f32 %v546, 1.442695
    %v549 = vpow.pop %v548
    %v550 = vmul.f32 %v547, 1.442695
    %v551 = vpow.pop %v550
    %v552 = vadd.f32 %v549, 1.0
    %v553 = vadd.f32 %v551, 1.0
    %v554 = vlog2.pop %v552
    %v555 = vmul.f32 %v554, 0.6931472
    %v556 = vlog2.pop %v553
    %v557 = vmul.f32 %v556, 0.6931472
    %v558 = vadd.f32 %v542, %v555
    %v559 = vadd.f32 %v543, %v557
    %v560 = vmul.f32 %v70, %v427
    %v561 = vmul.f32 %v71, %v426
    %v562 = vmul.f32 %v560, 1.442695
    %v563 = vpow.pop %v562
    %v564 = vmul.f32 %v561, 1.442695
    %v565 = vpow.pop %v564
    %v566 = vadd.f32 %v558, %v563
    %v567 = vadd.f32 %v559, %v565
    %v568 = vadd.f32 %v566, 1e-06
    %v569 = vadd.f32 %v567, 1e-06
    %v570 = vrcp.pop %v568
    %v571 = vrcp.pop %v569
    %v572 = vmul.f32 %v100, %v570
    %v573 = vmul.f32 %v101, %v571
    %v574 = vadd.f32 %v532, %v572
    %v575 = vadd.f32 %v533, %v573
    %576 = vrot.lane.b32.xlu0 %v419, 127
    %v577 = vpop.permute.xlu0 %576
    %578 = vrot.lane.b32.xlu0 %v418, 127
    %v579 = vpop.permute.xlu0 %578
    %580 = vrot.lane.b32.xlu0 %v423, 127
    %v581 = vpop.permute.xlu0 %580
    %582 = vrot.lane.b32.xlu0 %v422, 127
    %v583 = vpop.permute.xlu0 %582
    %584 = vrot.lane.b32.xlu0 %v427, 127
    %v585 = vpop.permute.xlu0 %584
    %586 = vrot.lane.b32.xlu0 %v426, 127
    %v587 = vpop.permute.xlu0 %586
    %v588 = vmul.f32 %v32, %v577
    %v589 = vmul.f32 %v33, %v579
    %v590 = vmul.f32 %v34, %v581
    %v591 = vmul.f32 %v35, %v583
    %v592 = vmax.f32 %v588, 0.0
    %v593 = vmax.f32 %v589, 0.0
    %v594 = vmul.f32 %v588, %v590
    %v595 = vmul.f32 %v589, %v591
    %v596 = vsub.f32 %v592, %v594
    %v597 = vsub.f32 %v593, %v595
    %v598 = vand.u32 2147483647, %v588
    %v599 = vand.u32 2147483647, %v589
    %v600 = vsub.f32 0.0, %v598
    %v601 = vsub.f32 0.0, %v599
    %v602 = vmul.f32 %v600, 1.442695
    %v603 = vpow.pop %v602
    %v604 = vmul.f32 %v601, 1.442695
    %v605 = vpow.pop %v604
    %v606 = vadd.f32 %v603, 1.0
    %v607 = vadd.f32 %v605, 1.0
    %v608 = vlog2.pop %v606
    %v609 = vmul.f32 %v608, 0.6931472
    %v610 = vlog2.pop %v607
    %v611 = vmul.f32 %v610, 0.6931472
    %v612 = vadd.f32 %v596, %v609
    %v613 = vadd.f32 %v597, %v611
    %v614 = vmul.f32 %v70, %v585
    %v615 = vmul.f32 %v71, %v587
    %v616 = vmul.f32 %v614, 1.442695
    %v617 = vpow.pop %v616
    %v618 = vmul.f32 %v615, 1.442695
    %v619 = vpow.pop %v618
    %v620 = vadd.f32 %v612, %v617
    %v621 = vadd.f32 %v613, %v619
    %v622 = vadd.f32 %v620, 1e-06
    %v623 = vadd.f32 %v621, 1e-06
    %v624 = vrcp.pop %v622
    %v625 = vrcp.pop %v623
    %v626 = vmul.f32 %v114, %v624
    %v627 = vmul.f32 %v115, %v625
    %v628 = vadd.f32 %v574, %v626
    %v629 = vadd.f32 %v575, %v627
    %630 = vrot.lane.b32.xlu0 %v419, 126
    %v631 = vpop.permute.xlu0 %630
    %632 = vrot.lane.b32.xlu0 %v418, 126
    %v633 = vpop.permute.xlu0 %632
    %634 = vrot.lane.b32.xlu0 %v423, 126
    %v635 = vpop.permute.xlu0 %634
    %636 = vrot.lane.b32.xlu0 %v422, 126
    %v637 = vpop.permute.xlu0 %636
    %638 = vrot.lane.b32.xlu0 %v427, 126
    %v639 = vpop.permute.xlu0 %638
    %640 = vrot.lane.b32.xlu0 %v426, 126
    %v641 = vpop.permute.xlu0 %640
    %v642 = vmul.f32 %v32, %v631
    %v643 = vmul.f32 %v33, %v633
    %v644 = vmul.f32 %v34, %v635
    %v645 = vmul.f32 %v35, %v637
    %v646 = vmax.f32 %v642, 0.0
    %v647 = vmax.f32 %v643, 0.0
    %v648 = vmul.f32 %v642, %v644
    %v649 = vmul.f32 %v643, %v645
    %v650 = vsub.f32 %v646, %v648
    %v651 = vsub.f32 %v647, %v649
    %v652 = vand.u32 2147483647, %v642
    %v653 = vand.u32 2147483647, %v643
    %v654 = vsub.f32 0.0, %v652
    %v655 = vsub.f32 0.0, %v653
    %v656 = vmul.f32 %v654, 1.442695
    %v657 = vpow.pop %v656
    %v658 = vmul.f32 %v655, 1.442695
    %v659 = vpow.pop %v658
    %v660 = vadd.f32 %v657, 1.0
    %v661 = vadd.f32 %v659, 1.0
    %v662 = vlog2.pop %v660
    %v663 = vmul.f32 %v662, 0.6931472
    %v664 = vlog2.pop %v661
    %v665 = vmul.f32 %v664, 0.6931472
    %v666 = vadd.f32 %v650, %v663
    %v667 = vadd.f32 %v651, %v665
    %v668 = vmul.f32 %v70, %v639
    %v669 = vmul.f32 %v71, %v641
    %v670 = vmul.f32 %v668, 1.442695
    %v671 = vpow.pop %v670
    %v672 = vmul.f32 %v669, 1.442695
    %v673 = vpow.pop %v672
    %v674 = vadd.f32 %v666, %v671
    %v675 = vadd.f32 %v667, %v673
    %v676 = vadd.f32 %v674, 1e-06
    %v677 = vadd.f32 %v675, 1e-06
    %v678 = vrcp.pop %v676
    %v679 = vrcp.pop %v677
    %v680 = vmul.f32 %v128, %v678
    %v681 = vmul.f32 %v129, %v679
    %v682 = vadd.f32 %v628, %v680
    %v683 = vadd.f32 %v629, %v681
    %684 = vset.pattern.permute.xlu0 1
    %685 = vperm.xlu0 %684, %v72
    %v686 = vpop.permute.xlu0 %685
    %688 = vset.pattern.permute.xlu0 1
    %689 = vperm.xlu0 %688, %v73
    %v690 = vpop.permute.xlu0 %689
    %v692 = vmul.f32 %v686, %v682
    %v693 = vmul.f32 %v690, %v683
    %v694 = vadd.f32 %v413, %v692
    %v695 = vadd.f32 %v414, %v693
    %696 = vrot.lane.b32.xlu0 %v32, 2
    %v697 = vpop.permute.xlu0 %696
    %698 = vrot.lane.b32.xlu0 %v33, 2
    %v699 = vpop.permute.xlu0 %698
    %700 = vrot.lane.b32.xlu0 %v34, 2
    %v701 = vpop.permute.xlu0 %700
    %702 = vrot.lane.b32.xlu0 %v35, 2
    %v703 = vpop.permute.xlu0 %702
    %704 = vrot.lane.b32.xlu0 %v67, 2
    %v705 = vpop.permute.xlu0 %704
    %706 = vrot.lane.b32.xlu0 %v69, 2
    %v707 = vpop.permute.xlu0 %706
    %v708 = vmul.f32 %v32, %v697
    %v709 = vmul.f32 %v33, %v699
    %v710 = vmul.f32 %v34, %v701
    %v711 = vmul.f32 %v35, %v703
    %v712 = vmax.f32 %v708, 0.0
    %v713 = vmax.f32 %v709, 0.0
    %v714 = vmul.f32 %v708, %v710
    %v715 = vmul.f32 %v709, %v711
    %v716 = vsub.f32 %v712, %v714
    %v717 = vsub.f32 %v713, %v715
    %v718 = vand.u32 2147483647, %v708
    %v719 = vand.u32 2147483647, %v709
    %v720 = vsub.f32 0.0, %v718
    %v721 = vsub.f32 0.0, %v719
    %v722 = vmul.f32 %v720, 1.442695
    %v723 = vpow.pop %v722
    %v724 = vmul.f32 %v721, 1.442695
    %v725 = vpow.pop %v724
    %v726 = vadd.f32 %v723, 1.0
    %v727 = vadd.f32 %v725, 1.0
    %v728 = vlog2.pop %v726
    %v729 = vmul.f32 %v728, 0.6931472
    %v730 = vlog2.pop %v727
    %v731 = vmul.f32 %v730, 0.6931472
    %v732 = vadd.f32 %v716, %v729
    %v733 = vadd.f32 %v717, %v731
    %v734 = vmul.f32 %v70, %v705
    %v735 = vmul.f32 %v71, %v707
    %v736 = vmul.f32 %v734, 1.442695
    %v737 = vpow.pop %v736
    %v738 = vmul.f32 %v735, 1.442695
    %v739 = vpow.pop %v738
    %v740 = vadd.f32 %v732, %v737
    %v741 = vadd.f32 %v733, %v739
    %v742 = vadd.f32 %v740, 1e-06
    %v743 = vadd.f32 %v741, 1e-06
    %v744 = vrcp.pop %v742
    %v745 = vrcp.pop %v743
    %v746 = vmul.f32 %v79, %v744
    %v747 = vmul.f32 %v80, %v745
    %748 = vrot.lane.b32.xlu0 %v32, 1
    %v749 = vpop.permute.xlu0 %748
    %750 = vrot.lane.b32.xlu0 %v33, 1
    %v751 = vpop.permute.xlu0 %750
    %752 = vrot.lane.b32.xlu0 %v34, 1
    %v753 = vpop.permute.xlu0 %752
    %754 = vrot.lane.b32.xlu0 %v35, 1
    %v755 = vpop.permute.xlu0 %754
    %756 = vrot.lane.b32.xlu0 %v67, 1
    %v757 = vpop.permute.xlu0 %756
    %758 = vrot.lane.b32.xlu0 %v69, 1
    %v759 = vpop.permute.xlu0 %758
    %v760 = vmul.f32 %v32, %v749
    %v761 = vmul.f32 %v33, %v751
    %v762 = vmul.f32 %v34, %v753
    %v763 = vmul.f32 %v35, %v755
    %v764 = vmax.f32 %v760, 0.0
    %v765 = vmax.f32 %v761, 0.0
    %v766 = vmul.f32 %v760, %v762
    %v767 = vmul.f32 %v761, %v763
    %v768 = vsub.f32 %v764, %v766
    %v769 = vsub.f32 %v765, %v767
    %v770 = vand.u32 2147483647, %v760
    %v771 = vand.u32 2147483647, %v761
    %v772 = vsub.f32 0.0, %v770
    %v773 = vsub.f32 0.0, %v771
    %v774 = vmul.f32 %v772, 1.442695
    %v775 = vpow.pop %v774
    %v776 = vmul.f32 %v773, 1.442695
    %v777 = vpow.pop %v776
    %v778 = vadd.f32 %v775, 1.0
    %v779 = vadd.f32 %v777, 1.0
    %v780 = vlog2.pop %v778
    %v781 = vmul.f32 %v780, 0.6931472
    %v782 = vlog2.pop %v779
    %v783 = vmul.f32 %v782, 0.6931472
    %v784 = vadd.f32 %v768, %v781
    %v785 = vadd.f32 %v769, %v783
    %v786 = vmul.f32 %v70, %v757
    %v787 = vmul.f32 %v71, %v759
    %v788 = vmul.f32 %v786, 1.442695
    %v789 = vpow.pop %v788
    %v790 = vmul.f32 %v787, 1.442695
    %v791 = vpow.pop %v790
    %v792 = vadd.f32 %v784, %v789
    %v793 = vadd.f32 %v785, %v791
    %v794 = vadd.f32 %v792, 1e-06
    %v795 = vadd.f32 %v793, 1e-06
    %v796 = vrcp.pop %v794
    %v797 = vrcp.pop %v795
    %v798 = vmul.f32 %v86, %v796
    %v799 = vmul.f32 %v87, %v797
    %v800 = vadd.f32 %v746, %v798
    %v801 = vadd.f32 %v747, %v799
    %v802 = vmul.f32 %v32, %v32
    %v803 = vmul.f32 %v33, %v33
    %v804 = vmul.f32 %v34, %v34
    %v805 = vmul.f32 %v35, %v35
    %v806 = vmax.f32 %v802, 0.0
    %v807 = vmax.f32 %v803, 0.0
    %v808 = vmul.f32 %v802, %v804
    %v809 = vmul.f32 %v803, %v805
    %v810 = vsub.f32 %v806, %v808
    %v811 = vsub.f32 %v807, %v809
    %v812 = vand.u32 2147483647, %v802
    %v813 = vand.u32 2147483647, %v803
    %v814 = vsub.f32 0.0, %v812
    %v815 = vsub.f32 0.0, %v813
    %v816 = vmul.f32 %v814, 1.442695
    %v817 = vpow.pop %v816
    %v818 = vmul.f32 %v815, 1.442695
    %v819 = vpow.pop %v818
    %v820 = vadd.f32 %v817, 1.0
    %v821 = vadd.f32 %v819, 1.0
    %v822 = vlog2.pop %v820
    %v823 = vmul.f32 %v822, 0.6931472
    %v824 = vlog2.pop %v821
    %v825 = vmul.f32 %v824, 0.6931472
    %v826 = vadd.f32 %v810, %v823
    %v827 = vadd.f32 %v811, %v825
    %v828 = vmul.f32 %v70, %v67
    %v829 = vmul.f32 %v71, %v69
    %v830 = vmul.f32 %v828, 1.442695
    %v831 = vpow.pop %v830
    %v832 = vmul.f32 %v829, 1.442695
    %v833 = vpow.pop %v832
    %v834 = vadd.f32 %v826, %v831
    %v835 = vadd.f32 %v827, %v833
    %v836 = vadd.f32 %v834, 1e-06
    %v837 = vadd.f32 %v835, 1e-06
    %v838 = vrcp.pop %v836
    %v839 = vrcp.pop %v837
    %v840 = vmul.f32 %v100, %v838
    %v841 = vmul.f32 %v101, %v839
    %v842 = vadd.f32 %v800, %v840
    %v843 = vadd.f32 %v801, %v841
    %844 = vrot.lane.b32.xlu0 %v32, 127
    %v845 = vpop.permute.xlu0 %844
    %846 = vrot.lane.b32.xlu0 %v33, 127
    %v847 = vpop.permute.xlu0 %846
    %848 = vrot.lane.b32.xlu0 %v34, 127
    %v849 = vpop.permute.xlu0 %848
    %850 = vrot.lane.b32.xlu0 %v35, 127
    %v851 = vpop.permute.xlu0 %850
    %852 = vrot.lane.b32.xlu0 %v67, 127
    %v853 = vpop.permute.xlu0 %852
    %854 = vrot.lane.b32.xlu0 %v69, 127
    %v855 = vpop.permute.xlu0 %854
    %v856 = vmul.f32 %v32, %v845
    %v857 = vmul.f32 %v33, %v847
    %v858 = vmul.f32 %v34, %v849
    %v859 = vmul.f32 %v35, %v851
    %v860 = vmax.f32 %v856, 0.0
    %v861 = vmax.f32 %v857, 0.0
    %v862 = vmul.f32 %v856, %v858
    %v863 = vmul.f32 %v857, %v859
    %v864 = vsub.f32 %v860, %v862
    %v865 = vsub.f32 %v861, %v863
    %v866 = vand.u32 2147483647, %v856
    %v867 = vand.u32 2147483647, %v857
    %v868 = vsub.f32 0.0, %v866
    %v869 = vsub.f32 0.0, %v867
    %v870 = vmul.f32 %v868, 1.442695
    %v871 = vpow.pop %v870
    %v872 = vmul.f32 %v869, 1.442695
    %v873 = vpow.pop %v872
    %v874 = vadd.f32 %v871, 1.0
    %v875 = vadd.f32 %v873, 1.0
    %v876 = vlog2.pop %v874
    %v877 = vmul.f32 %v876, 0.6931472
    %v878 = vlog2.pop %v875
    %v879 = vmul.f32 %v878, 0.6931472
    %v880 = vadd.f32 %v864, %v877
    %v881 = vadd.f32 %v865, %v879
    %v882 = vmul.f32 %v70, %v853
    %v883 = vmul.f32 %v71, %v855
    %v884 = vmul.f32 %v882, 1.442695
    %v885 = vpow.pop %v884
    %v886 = vmul.f32 %v883, 1.442695
    %v887 = vpow.pop %v886
    %v888 = vadd.f32 %v880, %v885
    %v889 = vadd.f32 %v881, %v887
    %v890 = vadd.f32 %v888, 1e-06
    %v891 = vadd.f32 %v889, 1e-06
    %v892 = vrcp.pop %v890
    %v893 = vrcp.pop %v891
    %v894 = vmul.f32 %v114, %v892
    %v895 = vmul.f32 %v115, %v893
    %v896 = vadd.f32 %v842, %v894
    %v897 = vadd.f32 %v843, %v895
    %898 = vrot.lane.b32.xlu0 %v32, 126
    %v899 = vpop.permute.xlu0 %898
    %900 = vrot.lane.b32.xlu0 %v33, 126
    %v901 = vpop.permute.xlu0 %900
    %902 = vrot.lane.b32.xlu0 %v34, 126
    %v903 = vpop.permute.xlu0 %902
    %904 = vrot.lane.b32.xlu0 %v35, 126
    %v905 = vpop.permute.xlu0 %904
    %906 = vrot.lane.b32.xlu0 %v67, 126
    %v907 = vpop.permute.xlu0 %906
    %908 = vrot.lane.b32.xlu0 %v69, 126
    %v909 = vpop.permute.xlu0 %908
    %v910 = vmul.f32 %v32, %v899
    %v911 = vmul.f32 %v33, %v901
    %v912 = vmul.f32 %v34, %v903
    %v913 = vmul.f32 %v35, %v905
    %v914 = vmax.f32 %v910, 0.0
    %v915 = vmax.f32 %v911, 0.0
    %v916 = vmul.f32 %v910, %v912
    %v917 = vmul.f32 %v911, %v913
    %v918 = vsub.f32 %v914, %v916
    %v919 = vsub.f32 %v915, %v917
    %v920 = vand.u32 2147483647, %v910
    %v921 = vand.u32 2147483647, %v911
    %v922 = vsub.f32 0.0, %v920
    %v923 = vsub.f32 0.0, %v921
    %v924 = vmul.f32 %v922, 1.442695
    %v925 = vpow.pop %v924
    %v926 = vmul.f32 %v923, 1.442695
    %v927 = vpow.pop %v926
    %v928 = vadd.f32 %v925, 1.0
    %v929 = vadd.f32 %v927, 1.0
    %v930 = vlog2.pop %v928
    %v931 = vmul.f32 %v930, 0.6931472
    %v932 = vlog2.pop %v929
    %v933 = vmul.f32 %v932, 0.6931472
    %v934 = vadd.f32 %v918, %v931
    %v935 = vadd.f32 %v919, %v933
    %v936 = vmul.f32 %v70, %v907
    %v937 = vmul.f32 %v71, %v909
    %v938 = vmul.f32 %v936, 1.442695
    %v939 = vpow.pop %v938
    %v940 = vmul.f32 %v937, 1.442695
    %v941 = vpow.pop %v940
    %v942 = vadd.f32 %v934, %v939
    %v943 = vadd.f32 %v935, %v941
    %v944 = vadd.f32 %v942, 1e-06
    %v945 = vadd.f32 %v943, 1e-06
    %v946 = vrcp.pop %v944
    %v947 = vrcp.pop %v945
    %v948 = vmul.f32 %v128, %v946
    %v949 = vmul.f32 %v129, %v947
    %v950 = vadd.f32 %v896, %v948
    %v951 = vadd.f32 %v897, %v949
    %952 = vset.pattern.permute.xlu0 2
    %953 = vperm.xlu0 %952, %v72
    %v954 = vpop.permute.xlu0 %953
    %956 = vset.pattern.permute.xlu0 2
    %957 = vperm.xlu0 %956, %v73
    %v958 = vpop.permute.xlu0 %957
    %v960 = vmul.f32 %v954, %v950
    %v961 = vmul.f32 %v958, %v951
    %v962 = vadd.f32 %v694, %v960
    %v963 = vadd.f32 %v695, %v961
    %v964 = vrot.slane %v32, 1
    %v965 = vrot.slane %v33, 1
    %vm966 = vcmp.lt.s32.totalorder %v133, 7
    %v967 = vsel %vm966, %v964, %v965
    %v968 = vsel %vm966, %v965, %v964
    %v969 = vrot.slane %v34, 1
    %v970 = vrot.slane %v35, 1
    %v971 = vsel %vm966, %v969, %v970
    %v972 = vsel %vm966, %v970, %v969
    %v973 = vrot.slane %v67, 1
    %v974 = vrot.slane %v69, 1
    %v975 = vsel %vm966, %v973, %v974
    %v976 = vsel %vm966, %v974, %v973
    %977 = vrot.lane.b32.xlu0 %v967, 2
    %v978 = vpop.permute.xlu0 %977
    %979 = vrot.lane.b32.xlu0 %v968, 2
    %v980 = vpop.permute.xlu0 %979
    %981 = vrot.lane.b32.xlu0 %v971, 2
    %v982 = vpop.permute.xlu0 %981
    %983 = vrot.lane.b32.xlu0 %v972, 2
    %v984 = vpop.permute.xlu0 %983
    %985 = vrot.lane.b32.xlu0 %v975, 2
    %v986 = vpop.permute.xlu0 %985
    %987 = vrot.lane.b32.xlu0 %v976, 2
    %v988 = vpop.permute.xlu0 %987
    %v989 = vmul.f32 %v32, %v978
    %v990 = vmul.f32 %v33, %v980
    %v991 = vmul.f32 %v34, %v982
    %v992 = vmul.f32 %v35, %v984
    %v993 = vmax.f32 %v989, 0.0
    %v994 = vmax.f32 %v990, 0.0
    %v995 = vmul.f32 %v989, %v991
    %v996 = vmul.f32 %v990, %v992
    %v997 = vsub.f32 %v993, %v995
    %v998 = vsub.f32 %v994, %v996
    %v999 = vand.u32 2147483647, %v989
    %v1000 = vand.u32 2147483647, %v990
    %v1001 = vsub.f32 0.0, %v999
    %v1002 = vsub.f32 0.0, %v1000
    %v1003 = vmul.f32 %v1001, 1.442695
    %v1004 = vpow.pop %v1003
    %v1005 = vmul.f32 %v1002, 1.442695
    %v1006 = vpow.pop %v1005
    %v1007 = vadd.f32 %v1004, 1.0
    %v1008 = vadd.f32 %v1006, 1.0
    %v1009 = vlog2.pop %v1007
    %v1010 = vmul.f32 %v1009, 0.6931472
    %v1011 = vlog2.pop %v1008
    %v1012 = vmul.f32 %v1011, 0.6931472
    %v1013 = vadd.f32 %v997, %v1010
    %v1014 = vadd.f32 %v998, %v1012
    %v1015 = vmul.f32 %v70, %v986
    %v1016 = vmul.f32 %v71, %v988
    %v1017 = vmul.f32 %v1015, 1.442695
    %v1018 = vpow.pop %v1017
    %v1019 = vmul.f32 %v1016, 1.442695
    %v1020 = vpow.pop %v1019
    %v1021 = vadd.f32 %v1013, %v1018
    %v1022 = vadd.f32 %v1014, %v1020
    %v1023 = vadd.f32 %v1021, 1e-06
    %v1024 = vadd.f32 %v1022, 1e-06
    %v1025 = vrcp.pop %v1023
    %v1026 = vrcp.pop %v1024
    %v1027 = vmul.f32 %v79, %v1025
    %v1028 = vmul.f32 %v80, %v1026
    %1029 = vrot.lane.b32.xlu0 %v967, 1
    %v1030 = vpop.permute.xlu0 %1029
    %1031 = vrot.lane.b32.xlu0 %v968, 1
    %v1032 = vpop.permute.xlu0 %1031
    %1033 = vrot.lane.b32.xlu0 %v971, 1
    %v1034 = vpop.permute.xlu0 %1033
    %1035 = vrot.lane.b32.xlu0 %v972, 1
    %v1036 = vpop.permute.xlu0 %1035
    %1037 = vrot.lane.b32.xlu0 %v975, 1
    %v1038 = vpop.permute.xlu0 %1037
    %1039 = vrot.lane.b32.xlu0 %v976, 1
    %v1040 = vpop.permute.xlu0 %1039
    %v1041 = vmul.f32 %v32, %v1030
    %v1042 = vmul.f32 %v33, %v1032
    %v1043 = vmul.f32 %v34, %v1034
    %v1044 = vmul.f32 %v35, %v1036
    %v1045 = vmax.f32 %v1041, 0.0
    %v1046 = vmax.f32 %v1042, 0.0
    %v1047 = vmul.f32 %v1041, %v1043
    %v1048 = vmul.f32 %v1042, %v1044
    %v1049 = vsub.f32 %v1045, %v1047
    %v1050 = vsub.f32 %v1046, %v1048
    %v1051 = vand.u32 2147483647, %v1041
    %v1052 = vand.u32 2147483647, %v1042
    %v1053 = vsub.f32 0.0, %v1051
    %v1054 = vsub.f32 0.0, %v1052
    %v1055 = vmul.f32 %v1053, 1.442695
    %v1056 = vpow.pop %v1055
    %v1057 = vmul.f32 %v1054, 1.442695
    %v1058 = vpow.pop %v1057
    %v1059 = vadd.f32 %v1056, 1.0
    %v1060 = vadd.f32 %v1058, 1.0
    %v1061 = vlog2.pop %v1059
    %v1062 = vmul.f32 %v1061, 0.6931472
    %v1063 = vlog2.pop %v1060
    %v1064 = vmul.f32 %v1063, 0.6931472
    %v1065 = vadd.f32 %v1049, %v1062
    %v1066 = vadd.f32 %v1050, %v1064
    %v1067 = vmul.f32 %v70, %v1038
    %v1068 = vmul.f32 %v71, %v1040
    %v1069 = vmul.f32 %v1067, 1.442695
    %v1070 = vpow.pop %v1069
    %v1071 = vmul.f32 %v1068, 1.442695
    %v1072 = vpow.pop %v1071
    %v1073 = vadd.f32 %v1065, %v1070
    %v1074 = vadd.f32 %v1066, %v1072
    %v1075 = vadd.f32 %v1073, 1e-06
    %v1076 = vadd.f32 %v1074, 1e-06
    %v1077 = vrcp.pop %v1075
    %v1078 = vrcp.pop %v1076
    %v1079 = vmul.f32 %v86, %v1077
    %v1080 = vmul.f32 %v87, %v1078
    %v1081 = vadd.f32 %v1027, %v1079
    %v1082 = vadd.f32 %v1028, %v1080
    %v1083 = vmul.f32 %v32, %v967
    %v1084 = vmul.f32 %v33, %v968
    %v1085 = vmul.f32 %v34, %v971
    %v1086 = vmul.f32 %v35, %v972
    %v1087 = vmax.f32 %v1083, 0.0
    %v1088 = vmax.f32 %v1084, 0.0
    %v1089 = vmul.f32 %v1083, %v1085
    %v1090 = vmul.f32 %v1084, %v1086
    %v1091 = vsub.f32 %v1087, %v1089
    %v1092 = vsub.f32 %v1088, %v1090
    %v1093 = vand.u32 2147483647, %v1083
    %v1094 = vand.u32 2147483647, %v1084
    %v1095 = vsub.f32 0.0, %v1093
    %v1096 = vsub.f32 0.0, %v1094
    %v1097 = vmul.f32 %v1095, 1.442695
    %v1098 = vpow.pop %v1097
    %v1099 = vmul.f32 %v1096, 1.442695
    %v1100 = vpow.pop %v1099
    %v1101 = vadd.f32 %v1098, 1.0
    %v1102 = vadd.f32 %v1100, 1.0
    %v1103 = vlog2.pop %v1101
    %v1104 = vmul.f32 %v1103, 0.6931472
    %v1105 = vlog2.pop %v1102
    %v1106 = vmul.f32 %v1105, 0.6931472
    %v1107 = vadd.f32 %v1091, %v1104
    %v1108 = vadd.f32 %v1092, %v1106
    %v1109 = vmul.f32 %v70, %v975
    %v1110 = vmul.f32 %v71, %v976
    %v1111 = vmul.f32 %v1109, 1.442695
    %v1112 = vpow.pop %v1111
    %v1113 = vmul.f32 %v1110, 1.442695
    %v1114 = vpow.pop %v1113
    %v1115 = vadd.f32 %v1107, %v1112
    %v1116 = vadd.f32 %v1108, %v1114
    %v1117 = vadd.f32 %v1115, 1e-06
    %v1118 = vadd.f32 %v1116, 1e-06
    %v1119 = vrcp.pop %v1117
    %v1120 = vrcp.pop %v1118
    %v1121 = vmul.f32 %v100, %v1119
    %v1122 = vmul.f32 %v101, %v1120
    %v1123 = vadd.f32 %v1081, %v1121
    %v1124 = vadd.f32 %v1082, %v1122
    %1125 = vrot.lane.b32.xlu0 %v967, 127
    %v1126 = vpop.permute.xlu0 %1125
    %1127 = vrot.lane.b32.xlu0 %v968, 127
    %v1128 = vpop.permute.xlu0 %1127
    %1129 = vrot.lane.b32.xlu0 %v971, 127
    %v1130 = vpop.permute.xlu0 %1129
    %1131 = vrot.lane.b32.xlu0 %v972, 127
    %v1132 = vpop.permute.xlu0 %1131
    %1133 = vrot.lane.b32.xlu0 %v975, 127
    %v1134 = vpop.permute.xlu0 %1133
    %1135 = vrot.lane.b32.xlu0 %v976, 127
    %v1136 = vpop.permute.xlu0 %1135
    %v1137 = vmul.f32 %v32, %v1126
    %v1138 = vmul.f32 %v33, %v1128
    %v1139 = vmul.f32 %v34, %v1130
    %v1140 = vmul.f32 %v35, %v1132
    %v1141 = vmax.f32 %v1137, 0.0
    %v1142 = vmax.f32 %v1138, 0.0
    %v1143 = vmul.f32 %v1137, %v1139
    %v1144 = vmul.f32 %v1138, %v1140
    %v1145 = vsub.f32 %v1141, %v1143
    %v1146 = vsub.f32 %v1142, %v1144
    %v1147 = vand.u32 2147483647, %v1137
    %v1148 = vand.u32 2147483647, %v1138
    %v1149 = vsub.f32 0.0, %v1147
    %v1150 = vsub.f32 0.0, %v1148
    %v1151 = vmul.f32 %v1149, 1.442695
    %v1152 = vpow.pop %v1151
    %v1153 = vmul.f32 %v1150, 1.442695
    %v1154 = vpow.pop %v1153
    %v1155 = vadd.f32 %v1152, 1.0
    %v1156 = vadd.f32 %v1154, 1.0
    %v1157 = vlog2.pop %v1155
    %v1158 = vmul.f32 %v1157, 0.6931472
    %v1159 = vlog2.pop %v1156
    %v1160 = vmul.f32 %v1159, 0.6931472
    %v1161 = vadd.f32 %v1145, %v1158
    %v1162 = vadd.f32 %v1146, %v1160
    %v1163 = vmul.f32 %v70, %v1134
    %v1164 = vmul.f32 %v71, %v1136
    %v1165 = vmul.f32 %v1163, 1.442695
    %v1166 = vpow.pop %v1165
    %v1167 = vmul.f32 %v1164, 1.442695
    %v1168 = vpow.pop %v1167
    %v1169 = vadd.f32 %v1161, %v1166
    %v1170 = vadd.f32 %v1162, %v1168
    %v1171 = vadd.f32 %v1169, 1e-06
    %v1172 = vadd.f32 %v1170, 1e-06
    %v1173 = vrcp.pop %v1171
    %v1174 = vrcp.pop %v1172
    %v1175 = vmul.f32 %v114, %v1173
    %v1176 = vmul.f32 %v115, %v1174
    %v1177 = vadd.f32 %v1123, %v1175
    %v1178 = vadd.f32 %v1124, %v1176
    %1179 = vrot.lane.b32.xlu0 %v967, 126
    %v1180 = vpop.permute.xlu0 %1179
    %1181 = vrot.lane.b32.xlu0 %v968, 126
    %v1182 = vpop.permute.xlu0 %1181
    %1183 = vrot.lane.b32.xlu0 %v971, 126
    %v1184 = vpop.permute.xlu0 %1183
    %1185 = vrot.lane.b32.xlu0 %v972, 126
    %v1186 = vpop.permute.xlu0 %1185
    %1187 = vrot.lane.b32.xlu0 %v975, 126
    %v1188 = vpop.permute.xlu0 %1187
    %1189 = vrot.lane.b32.xlu0 %v976, 126
    %v1190 = vpop.permute.xlu0 %1189
    %v1191 = vmul.f32 %v32, %v1180
    %v1192 = vmul.f32 %v33, %v1182
    %v1193 = vmul.f32 %v34, %v1184
    %v1194 = vmul.f32 %v35, %v1186
    %v1195 = vmax.f32 %v1191, 0.0
    %v1196 = vmax.f32 %v1192, 0.0
    %v1197 = vmul.f32 %v1191, %v1193
    %v1198 = vmul.f32 %v1192, %v1194
    %v1199 = vsub.f32 %v1195, %v1197
    %v1200 = vsub.f32 %v1196, %v1198
    %v1201 = vand.u32 2147483647, %v1191
    %v1202 = vand.u32 2147483647, %v1192
    %v1203 = vsub.f32 0.0, %v1201
    %v1204 = vsub.f32 0.0, %v1202
    %v1205 = vmul.f32 %v1203, 1.442695
    %v1206 = vpow.pop %v1205
    %v1207 = vmul.f32 %v1204, 1.442695
    %v1208 = vpow.pop %v1207
    %v1209 = vadd.f32 %v1206, 1.0
    %v1210 = vadd.f32 %v1208, 1.0
    %v1211 = vlog2.pop %v1209
    %v1212 = vmul.f32 %v1211, 0.6931472
    %v1213 = vlog2.pop %v1210
    %v1214 = vmul.f32 %v1213, 0.6931472
    %v1215 = vadd.f32 %v1199, %v1212
    %v1216 = vadd.f32 %v1200, %v1214
    %v1217 = vmul.f32 %v70, %v1188
    %v1218 = vmul.f32 %v71, %v1190
    %v1219 = vmul.f32 %v1217, 1.442695
    %v1220 = vpow.pop %v1219
    %v1221 = vmul.f32 %v1218, 1.442695
    %v1222 = vpow.pop %v1221
    %v1223 = vadd.f32 %v1215, %v1220
    %v1224 = vadd.f32 %v1216, %v1222
    %v1225 = vadd.f32 %v1223, 1e-06
    %v1226 = vadd.f32 %v1224, 1e-06
    %v1227 = vrcp.pop %v1225
    %v1228 = vrcp.pop %v1226
    %v1229 = vmul.f32 %v128, %v1227
    %v1230 = vmul.f32 %v129, %v1228
    %v1231 = vadd.f32 %v1177, %v1229
    %v1232 = vadd.f32 %v1178, %v1230
    %1233 = vset.pattern.permute.xlu0 3
    %1234 = vperm.xlu0 %1233, %v72
    %v1235 = vpop.permute.xlu0 %1234
    %1237 = vset.pattern.permute.xlu0 3
    %1238 = vperm.xlu0 %1237, %v73
    %v1239 = vpop.permute.xlu0 %1238
    %v1241 = vmul.f32 %v1235, %v1231
    %v1242 = vmul.f32 %v1239, %v1232
    %v1243 = vadd.f32 %v962, %v1241
    %v1244 = vadd.f32 %v963, %v1242
    %v1245 = vrot.slane %v32, 2
    %v1246 = vrot.slane %v33, 2
    %vm1247 = vcmp.lt.s32.totalorder %v133, 6
    %v1248 = vsel %vm1247, %v1245, %v1246
    %v1249 = vsel %vm1247, %v1246, %v1245
    %v1250 = vrot.slane %v34, 2
    %v1251 = vrot.slane %v35, 2
    %v1252 = vsel %vm1247, %v1250, %v1251
    %v1253 = vsel %vm1247, %v1251, %v1250
    %v1254 = vrot.slane %v67, 2
    %v1255 = vrot.slane %v69, 2
    %v1256 = vsel %vm1247, %v1254, %v1255
    %v1257 = vsel %vm1247, %v1255, %v1254
    %1258 = vrot.lane.b32.xlu0 %v1248, 2
    %v1259 = vpop.permute.xlu0 %1258
    %1260 = vrot.lane.b32.xlu0 %v1249, 2
    %v1261 = vpop.permute.xlu0 %1260
    %1262 = vrot.lane.b32.xlu0 %v1252, 2
    %v1263 = vpop.permute.xlu0 %1262
    %1264 = vrot.lane.b32.xlu0 %v1253, 2
    %v1265 = vpop.permute.xlu0 %1264
    %1266 = vrot.lane.b32.xlu0 %v1256, 2
    %v1267 = vpop.permute.xlu0 %1266
    %1268 = vrot.lane.b32.xlu0 %v1257, 2
    %v1269 = vpop.permute.xlu0 %1268
    %v1270 = vmul.f32 %v32, %v1259
    %v1271 = vmul.f32 %v33, %v1261
    %v1272 = vmul.f32 %v34, %v1263
    %v1273 = vmul.f32 %v35, %v1265
    %v1274 = vmax.f32 %v1270, 0.0
    %v1275 = vmax.f32 %v1271, 0.0
    %v1276 = vmul.f32 %v1270, %v1272
    %v1277 = vmul.f32 %v1271, %v1273
    %v1278 = vsub.f32 %v1274, %v1276
    %v1279 = vsub.f32 %v1275, %v1277
    %v1280 = vand.u32 2147483647, %v1270
    %v1281 = vand.u32 2147483647, %v1271
    %v1282 = vsub.f32 0.0, %v1280
    %v1283 = vsub.f32 0.0, %v1281
    %v1284 = vmul.f32 %v1282, 1.442695
    %v1285 = vpow.pop %v1284
    %v1286 = vmul.f32 %v1283, 1.442695
    %v1287 = vpow.pop %v1286
    %v1288 = vadd.f32 %v1285, 1.0
    %v1289 = vadd.f32 %v1287, 1.0
    %v1290 = vlog2.pop %v1288
    %v1291 = vmul.f32 %v1290, 0.6931472
    %v1292 = vlog2.pop %v1289
    %v1293 = vmul.f32 %v1292, 0.6931472
    %v1294 = vadd.f32 %v1278, %v1291
    %v1295 = vadd.f32 %v1279, %v1293
    %v1296 = vmul.f32 %v70, %v1267
    %v1297 = vmul.f32 %v71, %v1269
    %v1298 = vmul.f32 %v1296, 1.442695
    %v1299 = vpow.pop %v1298
    %v1300 = vmul.f32 %v1297, 1.442695
    %v1301 = vpow.pop %v1300
    %v1302 = vadd.f32 %v1294, %v1299
    %v1303 = vadd.f32 %v1295, %v1301
    %v1304 = vadd.f32 %v1302, 1e-06
    %v1305 = vadd.f32 %v1303, 1e-06
    %v1306 = vrcp.pop %v1304
    %v1307 = vrcp.pop %v1305
    %v1308 = vmul.f32 %v79, %v1306
    %v1309 = vmul.f32 %v80, %v1307
    %1310 = vrot.lane.b32.xlu0 %v1248, 1
    %v1311 = vpop.permute.xlu0 %1310
    %1312 = vrot.lane.b32.xlu0 %v1249, 1
    %v1313 = vpop.permute.xlu0 %1312
    %1314 = vrot.lane.b32.xlu0 %v1252, 1
    %v1315 = vpop.permute.xlu0 %1314
    %1316 = vrot.lane.b32.xlu0 %v1253, 1
    %v1317 = vpop.permute.xlu0 %1316
    %1318 = vrot.lane.b32.xlu0 %v1256, 1
    %v1319 = vpop.permute.xlu0 %1318
    %1320 = vrot.lane.b32.xlu0 %v1257, 1
    %v1321 = vpop.permute.xlu0 %1320
    %v1322 = vmul.f32 %v32, %v1311
    %v1323 = vmul.f32 %v33, %v1313
    %v1324 = vmul.f32 %v34, %v1315
    %v1325 = vmul.f32 %v35, %v1317
    %v1326 = vmax.f32 %v1322, 0.0
    %v1327 = vmax.f32 %v1323, 0.0
    %v1328 = vmul.f32 %v1322, %v1324
    %v1329 = vmul.f32 %v1323, %v1325
    %v1330 = vsub.f32 %v1326, %v1328
    %v1331 = vsub.f32 %v1327, %v1329
    %v1332 = vand.u32 2147483647, %v1322
    %v1333 = vand.u32 2147483647, %v1323
    %v1334 = vsub.f32 0.0, %v1332
    %v1335 = vsub.f32 0.0, %v1333
    %v1336 = vmul.f32 %v1334, 1.442695
    %v1337 = vpow.pop %v1336
    %v1338 = vmul.f32 %v1335, 1.442695
    %v1339 = vpow.pop %v1338
    %v1340 = vadd.f32 %v1337, 1.0
    %v1341 = vadd.f32 %v1339, 1.0
    %v1342 = vlog2.pop %v1340
    %v1343 = vmul.f32 %v1342, 0.6931472
    %v1344 = vlog2.pop %v1341
    %v1345 = vmul.f32 %v1344, 0.6931472
    %v1346 = vadd.f32 %v1330, %v1343
    %v1347 = vadd.f32 %v1331, %v1345
    %v1348 = vmul.f32 %v70, %v1319
    %v1349 = vmul.f32 %v71, %v1321
    %v1350 = vmul.f32 %v1348, 1.442695
    %v1351 = vpow.pop %v1350
    %v1352 = vmul.f32 %v1349, 1.442695
    %v1353 = vpow.pop %v1352
    %v1354 = vadd.f32 %v1346, %v1351
    %v1355 = vadd.f32 %v1347, %v1353
    %v1356 = vadd.f32 %v1354, 1e-06
    %v1357 = vadd.f32 %v1355, 1e-06
    %v1358 = vrcp.pop %v1356
    %v1359 = vrcp.pop %v1357
    %v1360 = vmul.f32 %v93, %v1358
    %v1361 = vmul.f32 %v94, %v1359
    %v1362 = vadd.f32 %v1308, %v1360
    %v1363 = vadd.f32 %v1309, %v1361
    %v1364 = vmul.f32 %v32, %v1248
    %v1365 = vmul.f32 %v33, %v1249
    %v1366 = vmul.f32 %v34, %v1252
    %v1367 = vmul.f32 %v35, %v1253
    %v1368 = vmax.f32 %v1364, 0.0
    %v1369 = vmax.f32 %v1365, 0.0
    %v1370 = vmul.f32 %v1364, %v1366
    %v1371 = vmul.f32 %v1365, %v1367
    %v1372 = vsub.f32 %v1368, %v1370
    %v1373 = vsub.f32 %v1369, %v1371
    %v1374 = vand.u32 2147483647, %v1364
    %v1375 = vand.u32 2147483647, %v1365
    %v1376 = vsub.f32 0.0, %v1374
    %v1377 = vsub.f32 0.0, %v1375
    %v1378 = vmul.f32 %v1376, 1.442695
    %v1379 = vpow.pop %v1378
    %v1380 = vmul.f32 %v1377, 1.442695
    %v1381 = vpow.pop %v1380
    %v1382 = vadd.f32 %v1379, 1.0
    %v1383 = vadd.f32 %v1381, 1.0
    %v1384 = vlog2.pop %v1382
    %v1385 = vmul.f32 %v1384, 0.6931472
    %v1386 = vlog2.pop %v1383
    %v1387 = vmul.f32 %v1386, 0.6931472
    %v1388 = vadd.f32 %v1372, %v1385
    %v1389 = vadd.f32 %v1373, %v1387
    %v1390 = vmul.f32 %v70, %v1256
    %v1391 = vmul.f32 %v71, %v1257
    %v1392 = vmul.f32 %v1390, 1.442695
    %v1393 = vpow.pop %v1392
    %v1394 = vmul.f32 %v1391, 1.442695
    %v1395 = vpow.pop %v1394
    %v1396 = vadd.f32 %v1388, %v1393
    %v1397 = vadd.f32 %v1389, %v1395
    %v1398 = vadd.f32 %v1396, 1e-06
    %v1399 = vadd.f32 %v1397, 1e-06
    %v1400 = vrcp.pop %v1398
    %v1401 = vrcp.pop %v1399
    %v1402 = vmul.f32 %v107, %v1400
    %v1403 = vmul.f32 %v108, %v1401
    %v1404 = vadd.f32 %v1362, %v1402
    %v1405 = vadd.f32 %v1363, %v1403
    %1406 = vrot.lane.b32.xlu0 %v1248, 127
    %v1407 = vpop.permute.xlu0 %1406
    %1408 = vrot.lane.b32.xlu0 %v1249, 127
    %v1409 = vpop.permute.xlu0 %1408
    %1410 = vrot.lane.b32.xlu0 %v1252, 127
    %v1411 = vpop.permute.xlu0 %1410
    %1412 = vrot.lane.b32.xlu0 %v1253, 127
    %v1413 = vpop.permute.xlu0 %1412
    %1414 = vrot.lane.b32.xlu0 %v1256, 127
    %v1415 = vpop.permute.xlu0 %1414
    %1416 = vrot.lane.b32.xlu0 %v1257, 127
    %v1417 = vpop.permute.xlu0 %1416
    %v1418 = vmul.f32 %v32, %v1407
    %v1419 = vmul.f32 %v33, %v1409
    %v1420 = vmul.f32 %v34, %v1411
    %v1421 = vmul.f32 %v35, %v1413
    %v1422 = vmax.f32 %v1418, 0.0
    %v1423 = vmax.f32 %v1419, 0.0
    %v1424 = vmul.f32 %v1418, %v1420
    %v1425 = vmul.f32 %v1419, %v1421
    %v1426 = vsub.f32 %v1422, %v1424
    %v1427 = vsub.f32 %v1423, %v1425
    %v1428 = vand.u32 2147483647, %v1418
    %v1429 = vand.u32 2147483647, %v1419
    %v1430 = vsub.f32 0.0, %v1428
    %v1431 = vsub.f32 0.0, %v1429
    %v1432 = vmul.f32 %v1430, 1.442695
    %v1433 = vpow.pop %v1432
    %v1434 = vmul.f32 %v1431, 1.442695
    %v1435 = vpow.pop %v1434
    %v1436 = vadd.f32 %v1433, 1.0
    %v1437 = vadd.f32 %v1435, 1.0
    %v1438 = vlog2.pop %v1436
    %v1439 = vmul.f32 %v1438, 0.6931472
    %v1440 = vlog2.pop %v1437
    %v1441 = vmul.f32 %v1440, 0.6931472
    %v1442 = vadd.f32 %v1426, %v1439
    %v1443 = vadd.f32 %v1427, %v1441
    %v1444 = vmul.f32 %v70, %v1415
    %v1445 = vmul.f32 %v71, %v1417
    %v1446 = vmul.f32 %v1444, 1.442695
    %v1447 = vpow.pop %v1446
    %v1448 = vmul.f32 %v1445, 1.442695
    %v1449 = vpow.pop %v1448
    %v1450 = vadd.f32 %v1442, %v1447
    %v1451 = vadd.f32 %v1443, %v1449
    %v1452 = vadd.f32 %v1450, 1e-06
    %v1453 = vadd.f32 %v1451, 1e-06
    %v1454 = vrcp.pop %v1452
    %v1455 = vrcp.pop %v1453
    %v1456 = vmul.f32 %v121, %v1454
    %v1457 = vmul.f32 %v122, %v1455
    %v1458 = vadd.f32 %v1404, %v1456
    %v1459 = vadd.f32 %v1405, %v1457
    %1460 = vrot.lane.b32.xlu0 %v1248, 126
    %v1461 = vpop.permute.xlu0 %1460
    %1462 = vrot.lane.b32.xlu0 %v1249, 126
    %v1463 = vpop.permute.xlu0 %1462
    %1464 = vrot.lane.b32.xlu0 %v1252, 126
    %v1465 = vpop.permute.xlu0 %1464
    %1466 = vrot.lane.b32.xlu0 %v1253, 126
    %v1467 = vpop.permute.xlu0 %1466
    %1468 = vrot.lane.b32.xlu0 %v1256, 126
    %v1469 = vpop.permute.xlu0 %1468
    %1470 = vrot.lane.b32.xlu0 %v1257, 126
    %v1471 = vpop.permute.xlu0 %1470
    %v1472 = vmul.f32 %v32, %v1461
    %v1473 = vmul.f32 %v33, %v1463
    %v1474 = vmul.f32 %v34, %v1465
    %v1475 = vmul.f32 %v35, %v1467
    %v1476 = vmax.f32 %v1472, 0.0
    %v1477 = vmax.f32 %v1473, 0.0
    %v1478 = vmul.f32 %v1472, %v1474
    %v1479 = vmul.f32 %v1473, %v1475
    %v1480 = vsub.f32 %v1476, %v1478
    %v1481 = vsub.f32 %v1477, %v1479
    %v1482 = vand.u32 2147483647, %v1472
    %v1483 = vand.u32 2147483647, %v1473
    %v1484 = vsub.f32 0.0, %v1482
    %v1485 = vsub.f32 0.0, %v1483
    %v1486 = vmul.f32 %v1484, 1.442695
    %v1487 = vpow.pop %v1486
    %v1488 = vmul.f32 %v1485, 1.442695
    %v1489 = vpow.pop %v1488
    %v1490 = vadd.f32 %v1487, 1.0
    %v1491 = vadd.f32 %v1489, 1.0
    %v1492 = vlog2.pop %v1490
    %v1493 = vmul.f32 %v1492, 0.6931472
    %v1494 = vlog2.pop %v1491
    %v1495 = vmul.f32 %v1494, 0.6931472
    %v1496 = vadd.f32 %v1480, %v1493
    %v1497 = vadd.f32 %v1481, %v1495
    %v1498 = vmul.f32 %v70, %v1469
    %v1499 = vmul.f32 %v71, %v1471
    %v1500 = vmul.f32 %v1498, 1.442695
    %v1501 = vpow.pop %v1500
    %v1502 = vmul.f32 %v1499, 1.442695
    %v1503 = vpow.pop %v1502
    %v1504 = vadd.f32 %v1496, %v1501
    %v1505 = vadd.f32 %v1497, %v1503
    %v1506 = vadd.f32 %v1504, 1e-06
    %v1507 = vadd.f32 %v1505, 1e-06
    %v1508 = vrcp.pop %v1506
    %v1509 = vrcp.pop %v1507
    %v1510 = vmul.f32 %v128, %v1508
    %v1511 = vmul.f32 %v129, %v1509
    %v1512 = vadd.f32 %v1458, %v1510
    %v1513 = vadd.f32 %v1459, %v1511
    %1514 = vset.pattern.permute.xlu0 4
    %1515 = vperm.xlu0 %1514, %v72
    %v1516 = vpop.permute.xlu0 %1515
    %1518 = vset.pattern.permute.xlu0 4
    %1519 = vperm.xlu0 %1518, %v73
    %v1520 = vpop.permute.xlu0 %1519
    %v1522 = vmul.f32 %v1516, %v1512
    %v1523 = vmul.f32 %v1520, %v1513
    %v1524 = vadd.f32 %v1243, %v1522
    %v1525 = vadd.f32 %v1244, %v1523
    %v1526 = vadd.f32 %v1524, %v1525
    %v1527 = vrot.slane %v1526, 4
    %v1528 = vadd.f32 %v1526, %v1527
    %v1529 = vrot.slane %v1528, 2
    %v1530 = vadd.f32 %v1528, %v1529
    %v1531 = vrot.slane %v1530, 1
    %v1532 = vadd.f32 %v1530, %v1531
    %1533 = vadd.xlane.f32.xlu0 %v1532
    %v1534 = vpop.xlane.xlu0 %1533
    %vm1535 = vcmask 0
    %1536 = vst.msk [vmem:[#allocation5] sm:$0x1] %vm1535, %v1534
    // Predicated region
    $region22: #{tpu_custom_call.1} parent=1 // pred_check
      _
    $region23: #{tpu_custom_call.1} parent=1 // pred_check_branch
      %1538 = sbr.rel (0) target = $region25
    $region24: #{tpu_custom_call.1} parent=1 // pred_region
      %s1540 = ssub.s32 16, 16
      %1541 = vsyncadd [#allocation4], %s1540
      %s1543 = sshll.u32 [#allocation5], 4
      %s1544 = int_to_ptr.vmem [resolvable:$true] %s1543
      %1546 = dma.vmem_to_hbm [thread:$0]  %s1544, 16, %s4, [#allocation4]
    $region25: #{tpu_custom_call.1} parent=1 // pred_fallthru
      _
    // Predicated region
    $region26: #{tpu_custom_call.1} parent=1 // pred_check
      _
    $region27: #{tpu_custom_call.1} parent=1 // pred_check_branch
      %1548 = sbr.rel (0) target = $region29
    $region28: #{tpu_custom_call.1} parent=1 // pred_region
      %1549 = dma.done [#allocation4], 16
    $region29: #{tpu_custom_call.1} parent=1 // pred_fallthru
      _
    %1550 = vsyncpa [#allocation3], 1
    %1551 = vsyncpa [#allocation4], 1

</llo_original>
